<compile_context>
chip_gen: v6e
topology: v6e:2x2x1
jax: 0.10.0
libtpu: 0.0.40
codegen_flags: <defaults>
</compile_context>

<pallas_src>
import functools

import jax
import jax.numpy as jnp
from jax import lax
from jax.experimental import pallas as pl
from jax.experimental.pallas import tpu as pltpu

GN_GROUPS = 16     # nn.GroupNorm(16, out_planes)
GN_EPS = 1e-5      # nn.GroupNorm default eps
ATT_EPS = 1e-6     # Attention eps


def _round_up(x, m):
    return (x + m - 1) // m * m


def _att_agreg_kernel(group_size, n_total, matmul_dtype,
                      f1_ref, f2_ref, f3_ref,
                      wc1_ref, wc2_ref, wc3_ref,
                      gmap_ref, gn_affine_ref,
                      wkv_ref, bkv_ref, wq_ref, bq_ref,
                      gamma_ref,
                      out_ref,
                      ch_stats_ref, gn_ref, ksum_ref, vsum_ref, mat_ref):
    p = pl.program_id(1)          # phase: 0 = GN stats, 1 = attention stats, 2 = emit
    t = pl.program_id(2)          # spatial tile index
    cqp = ksum_ref.shape[0]       # padded query/key channel count

    def conv():
        # 1x1 conv (no bias), concat-free, f32 accumulation on the MXU.
        acc = jnp.dot(wc1_ref[...], f1_ref[0].astype(matmul_dtype),
                      preferred_element_type=jnp.float32)
        acc = acc + jnp.dot(wc2_ref[...], f2_ref[0].astype(matmul_dtype),
                            preferred_element_type=jnp.float32)
        acc = acc + jnp.dot(wc3_ref[...], f3_ref[0].astype(matmul_dtype),
                            preferred_element_type=jnp.float32)
        return acc                                              # (Cout, TN) f32

    def feat_gn_relu():
        # GroupNorm folded into per-channel scale/shift (computed once per batch).
        return jnp.maximum(conv() * gn_ref[:, 0:1] + gn_ref[:, 1:2], 0.0)

    # ---- per-batch scratch init ------------------------------------------------
    @pl.when((p == 0) & (t == 0))
    def _init():
        ch_stats_ref[...] = jnp.zeros_like(ch_stats_ref)
        ksum_ref[...] = jnp.zeros_like(ksum_ref)
        vsum_ref[...] = jnp.zeros_like(vsum_ref)
        mat_ref[...] = jnp.zeros_like(mat_ref)

    # ---- phase 0: GroupNorm statistics ------------------------------------------
    @pl.when(p == 0)
    def _gn_stats():
        feat = conv()
        ch_stats_ref[...] += jnp.concatenate(
            [jnp.sum(feat, axis=-1, keepdims=True),
             jnp.sum(feat * feat, axis=-1, keepdims=True)], axis=-1)

    # ---- phase 1 entry: finalize GroupNorm into per-channel scale / shift -------
    @pl.when((p == 1) & (t == 0))
    def _gn_finalize():
        grp = lax.dot_general(gmap_ref[...], ch_stats_ref[...],
                              (((0,), (0,)), ((), ())),
                              preferred_element_type=jnp.float32)        # (G, 2)
        inv_n = 1.0 / jnp.float32(group_size * n_total)
        g_mean = grp[:, 0:1] * inv_n
        g_var = grp[:, 1:2] * inv_n - g_mean * g_mean                    # biased (torch)
        g_rstd = lax.rsqrt(g_var + GN_EPS)
        ch = jnp.dot(gmap_ref[...], jnp.concatenate([g_mean, g_rstd], axis=-1),
                     preferred_element_type=jnp.float32)                 # (Cout, 2)
        scale = ch[:, 1:2] * gn_affine_ref[:, 0:1]
        shift = gn_affine_ref[:, 1:2] - ch[:, 0:1] * scale
        gn_ref[...] = jnp.concatenate([scale, shift], axis=-1)

    # ---- phase 1: attention statistics (k_sum, v_sum, V @ Kn^T) ------------------
    @pl.when(p == 1)
    def _att_stats():
        feat = feat_gn_relu().astype(matmul_dtype)
        kv = (jnp.dot(wkv_ref[...], feat, preferred_element_type=jnp.float32)
              + bkv_ref[...])
        k = kv[:cqp, :]
        v = kv[cqp:, :]
        kn = k * lax.rsqrt(jnp.sum(k * k, axis=0, keepdims=True))        # l2_norm (no eps)
        ksum_ref[...] += jnp.sum(kn, axis=-1, keepdims=True)
        vsum_ref[...] += jnp.sum(v, axis=-1, keepdims=True)
        mat_ref[...] += lax.dot_general(v, kn, (((1,), (1,)), ((), ())),
                                        preferred_element_type=jnp.float32)  # (Cout, Cqp)

    # ---- phase 2: emit output tiles ----------------------------------------------
    @pl.when(p == 2)
    def _emit():
        feat = feat_gn_relu()
        q = (jnp.dot(wq_ref[...], feat.astype(matmul_dtype),
                     preferred_element_type=jnp.float32) + bq_ref[...])
        qn = q * lax.rsqrt(jnp.sum(q * q, axis=0, keepdims=True))        # l2_norm (no eps)
        denom = jnp.sum(qn * (ksum_ref[...] + ATT_EPS), axis=0, keepdims=True)   # (1, TN)
        tailor = 1.0 / (jnp.float32(n_total) + denom)
        term = jnp.dot(mat_ref[...], qn, preferred_element_type=jnp.float32)     # (Cout, TN)
        att = gamma_ref[0] * ((vsum_ref[...] + term) * tailor)
        out_ref[0] = (att + feat).astype(out_ref.dtype)                  # residual add


def att_agreg(f1, f2, f3, params, *, block_n=None, matmul_dtype=jnp.float32):
    B, C1, H, W = f1.shape
    _, C2, _, _ = f2.shape
    _, C3, _, _ = f3.shape
    assert f2.shape == (B, C2, H, W) and f3.shape == (B, C3, H, W)
    assert H == W, "original module's reshape only type-checks for square inputs"
    N = H * W

    wc = params["wc"]                              # (Cout, Cin) 1x1 conv, no bias
    Cout, Cin = wc.shape
    assert Cin == C1 + C2 + C3 and Cout % GN_GROUPS == 0
    gs = Cout // GN_GROUPS
    cq = params["wq"].shape[0]
    cqp = _round_up(cq, 8)                         # pad q/k rows to a sublane multiple

    # Split the conv weight -> no HBM materialization of concat([f1, f2, f3]).
    wc1 = wc[:, :C1].astype(matmul_dtype)
    wc2 = wc[:, C1:C1 + C2].astype(matmul_dtype)
    wc3 = wc[:, C1 + C2:].astype(matmul_dtype)

    # Zero-padded q / k projections (zero rows contribute exactly zero everywhere).
    # k and v are fused into one matmul (phase 1 only); q is its own small matmul
    # (phase 2 only), so neither phase does redundant MXU work.
    def pad_rows(w, b):
        wp = jnp.zeros((cqp, Cout), w.dtype).at[:cq].set(w)
        bp = jnp.zeros((cqp, 1), jnp.float32).at[:cq, 0].set(b)
        return wp, bp
    wq_p, bq_p = pad_rows(params["wq"], params["bq"])
    wk_p, bk_p = pad_rows(params["wk"], params["bk"])
    wkv = jnp.concatenate([wk_p, params["wv"]], axis=0).astype(matmul_dtype)   # (cqp+Cout, Cout)
    bkv = jnp.concatenate(
        [bk_p, params["bv"].reshape(Cout, 1).astype(jnp.float32)], axis=0)     # (cqp+Cout, 1)
    wq = wq_p.astype(matmul_dtype)
    bq = bq_p

    gmap = (jnp.arange(Cout)[:, None] // gs ==
            jnp.arange(GN_GROUPS)[None, :]).astype(jnp.float32)           # (Cout, G)
    gn_affine = jnp.stack([params["gn_weight"], params["gn_bias"]],
                          axis=1).astype(jnp.float32)                     # (Cout, 2)
    gamma = params["gamma"].reshape(1).astype(jnp.float32)                # SMEM scalar

    # Spatial tiling: largest 128-multiple tile <= 512 that divides N, else full N.
    if block_n is None:
        block_n = N
        for cand in (512, 384, 256, 128):
            if N % cand == 0:
                block_n = cand
                break
    assert N % block_n == 0
    nt = N // block_n

    f1r = f1.reshape(B, C1, N)
    f2r = f2.reshape(B, C2, N)
    f3r = f3.reshape(B, C3, N)
    out_dtype = f1.dtype

    def wspec(a):
        return pl.BlockSpec(a.shape, lambda b, p, t: (0,) * a.ndim)

    out_flat = pl.pallas_call(
        functools.partial(_att_agreg_kernel, gs, N, matmul_dtype),
        out_shape=jax.ShapeDtypeStruct((B, Cout, N), out_dtype),
        grid=(B, 3, nt),
        in_specs=[
            pl.BlockSpec((1, C1, block_n), lambda b, p, t: (b, 0, t)),
            pl.BlockSpec((1, C2, block_n), lambda b, p, t: (b, 0, t)),
            pl.BlockSpec((1, C3, block_n), lambda b, p, t: (b, 0, t)),
            wspec(wc1), wspec(wc2), wspec(wc3),
            wspec(gmap), wspec(gn_affine),
            wspec(wkv), wspec(bkv), wspec(wq), wspec(bq),
            pl.BlockSpec(memory_space=pltpu.MemorySpace.SMEM),            # gamma
        ],
        out_specs=pl.BlockSpec(
            (1, Cout, block_n),
            # Output tiles are produced only in phase 2; keep the block index
            # pinned during phases 0/1 so nothing is written back early (avoids
            # 3x output writeback traffic).
            lambda b, p, t: (b, 0, jnp.where(p == 2, t, 0))),
        scratch_shapes=[
            pltpu.VMEM((Cout, 2), jnp.float32),     # per-channel [sum, sum_sq]
            pltpu.VMEM((Cout, 2), jnp.float32),     # per-channel GN [scale, shift]
            pltpu.VMEM((cqp, 1), jnp.float32),      # sum_n Kn
            pltpu.VMEM((Cout, 1), jnp.float32),     # sum_n V
            pltpu.VMEM((Cout, cqp), jnp.float32),   # V @ Kn^T
        ],
        compiler_params=pltpu.CompilerParams(
            dimension_semantics=("parallel", "arbitrary", "arbitrary")),
    )(f1r, f2r, f3r, wc1, wc2, wc3, gmap, gn_affine, wkv, bkv, wq, bq, gamma)
    return out_flat.reshape(B, Cout, H, W)


def att_agreg_reference(f1, f2, f3, params):
    """Pure-JAX reference mirroring the PyTorch forward, for validation."""
    fcat = jnp.concatenate([f1, f2, f3], axis=1)
    B, Cin, H, W = fcat.shape
    N = H * W
    x = fcat.reshape(B, Cin, N)
    feat = jnp.einsum("oc,bcn->bon", params["wc"], x)
    Cout = feat.shape[1]
    g = feat.reshape(B, GN_GROUPS, -1)
    mean = g.mean(-1, keepdims=True)
    var = g.var(-1, keepdims=True)
    g = (g - mean) / jnp.sqrt(var + GN_EPS)
    feat = (g.reshape(B, Cout, N) * params["gn_weight"][None, :, None]
            + params["gn_bias"][None, :, None])
    feat = jnp.maximum(feat, 0.0)

    q = jnp.einsum("oc,bcn->bon", params["wq"], feat) + params["bq"][None, :, None]
    k = jnp.einsum("oc,bcn->bon", params["wk"], feat) + params["bk"][None, :, None]
    v = jnp.einsum("oc,bcn->bon", params["wv"], feat) + params["bv"][None, :, None]
    qn = q / jnp.linalg.norm(q, axis=-2, keepdims=True)
    kn = k / jnp.linalg.norm(k, axis=-2, keepdims=True)
    qp = jnp.transpose(qn, (0, 2, 1))                            # (B, N, Cq)
    tailor = 1.0 / (N + jnp.einsum("bnc,bc->bn", qp, jnp.sum(kn, -1) + ATT_EPS))
    value_sum = jnp.sum(v, -1)[:, :, None]
    matrix = jnp.einsum("bmn,bcn->bmc", kn, v)
    matrix_sum = value_sum + jnp.einsum("bnm,bmc->bcn", qp, matrix)
    weight_value = jnp.einsum("bcn,bn->bcn", matrix_sum, tailor)
    atten = params["gamma"].reshape(()) * weight_value
    return (atten + feat).reshape(B, Cout, H, W)


if __name__ == "__main__":
    key = jax.random.PRNGKey(0)
    B, H, W = 2, 16, 16
    c1, c2, c3 = 4, 4, 8                 # f1/f2/f3 channels -> in_ch = 16
    in_ch = c1 + c2 + c3
    out_ch = 32                          # divisible by 16 (GroupNorm) and 8 (scale)
    cq = out_ch // 8

    keys = jax.random.split(key, 12)
    f1 = jax.random.normal(keys[0], (B, c1, H, W), jnp.float32)
    f2 = jax.random.normal(keys[1], (B, c2, H, W), jnp.float32)
    f3 = jax.random.normal(keys[2], (B, c3, H, W), jnp.float32)

    params = {
        "wc": jax.random.normal(keys[3], (out_ch, in_ch), jnp.float32) * 0.1,
        "gn_weight": jnp.ones((out_ch,), jnp.float32),
        "gn_bias": jnp.zeros((out_ch,), jnp.float32),
        "wq": jax.random.normal(keys[4], (cq, out_ch), jnp.float32) * 0.1,
        "bq": jax.random.normal(keys[5], (cq,), jnp.float32) * 0.1,
        "wk": jax.random.normal(keys[6], (cq, out_ch), jnp.float32) * 0.1,
        "bk": jax.random.normal(keys[7], (cq,), jnp.float32) * 0.1,
        "wv": jax.random.normal(keys[8], (out_ch, out_ch), jnp.float32) * 0.1,
        "bv": jax.random.normal(keys[9], (out_ch,), jnp.float32) * 0.1,
        # NOTE: the PyTorch module inits gamma = 0 (which zeroes the attention
        # branch); a deterministic nonzero value is used so the attention math
        # inside the kernel is actually exercised.
        "gamma": jnp.full((1,), 0.5, jnp.float32),
    }

    ref = att_agreg_reference(f1, f2, f3, params)

    # f32 path with an explicit 128-wide spatial tile (2 tiles per image).
    out = jax.block_until_ready(att_agreg(f1, f2, f3, params, block_n=128))
    assert out.shape == (B, out_ch, H, W)
    err = float(jnp.max(jnp.abs(out - ref)))
    assert jnp.allclose(out, ref, rtol=1e-4, atol=2e-4), err

    # bf16-activation / bf16-matmul-operand path (f32 accumulation): halves HBM
    # traffic on this memory-bound kernel; validated with a loose tolerance.
    out_bf16 = jax.block_until_ready(
        att_agreg(f1.astype(jnp.bfloat16), f2.astype(jnp.bfloat16),
                  f3.astype(jnp.bfloat16), params, matmul_dtype=jnp.bfloat16))
    assert out_bf16.dtype == jnp.bfloat16
    out_bf16_f32 = out_bf16.astype(jnp.float32)
    assert bool(jnp.isfinite(out_bf16_f32).all())
    err_bf16 = float(jnp.max(jnp.abs(out_bf16_f32 - ref)))
    assert err_bf16 < 0.25, err_bf16

    print("KERNEL_OK")
</pallas_src>

<mosaic_0001>
module attributes {stable_mosaic.version = 11 : i64} {
  func.func @_att_agreg_kernel(%arg0: i32, %arg1: i32, %arg2: i32, %arg3: memref<1x4x128xf32, #tpu.memory_space<vmem>>, %arg4: memref<1x4x128xf32, #tpu.memory_space<vmem>>, %arg5: memref<1x8x128xf32, #tpu.memory_space<vmem>>, %arg6: memref<32x4xf32, #tpu.memory_space<vmem>>, %arg7: memref<32x4xf32, #tpu.memory_space<vmem>>, %arg8: memref<32x8xf32, #tpu.memory_space<vmem>>, %arg9: memref<32x16xf32, #tpu.memory_space<vmem>>, %arg10: memref<32x2xf32, #tpu.memory_space<vmem>>, %arg11: memref<40x32xf32, #tpu.memory_space<vmem>>, %arg12: memref<40x1xf32, #tpu.memory_space<vmem>>, %arg13: memref<8x32xf32, #tpu.memory_space<vmem>>, %arg14: memref<8x1xf32, #tpu.memory_space<vmem>>, %arg15: memref<1xf32, #tpu.memory_space<smem>>, %arg16: memref<1x32x128xf32, #tpu.memory_space<vmem>>, %arg17: memref<32x2xf32, #tpu.memory_space<vmem>>, %arg18: memref<32x2xf32, #tpu.memory_space<vmem>>, %arg19: memref<8x1xf32, #tpu.memory_space<vmem>>, %arg20: memref<32x1xf32, #tpu.memory_space<vmem>>, %arg21: memref<32x8xf32, #tpu.memory_space<vmem>>) attributes {dimension_semantics = [#tpu.dimension_semantics<parallel>, #tpu.dimension_semantics<arbitrary>, #tpu.dimension_semantics<arbitrary>], iteration_bounds = array<i64: 2, 3, 2>, scalar_prefetch = 0 : i64, scratch_operands = 5 : i64, tpu.core_type = #tpu.core_type<tc>, window_params = [{transform_indices = @transform_0, window_bounds = array<i64: 1, 4, 128>}, {transform_indices = @transform_1, window_bounds = array<i64: 1, 4, 128>}, {transform_indices = @transform_2, window_bounds = array<i64: 1, 8, 128>}, {pipeline_mode = #tpu.pipeline_mode<synchronous>, transform_indices = @transform_3, window_bounds = array<i64: 32, 4>}, {pipeline_mode = #tpu.pipeline_mode<synchronous>, transform_indices = @transform_4, window_bounds = array<i64: 32, 4>}, {pipeline_mode = #tpu.pipeline_mode<synchronous>, transform_indices = @transform_5, window_bounds = array<i64: 32, 8>}, {pipeline_mode = #tpu.pipeline_mode<synchronous>, transform_indices = @transform_6, window_bounds = array<i64: 32, 16>}, {pipeline_mode = #tpu.pipeline_mode<synchronous>, transform_indices = @transform_7, window_bounds = array<i64: 32, 2>}, {pipeline_mode = #tpu.pipeline_mode<synchronous>, transform_indices = @transform_8, window_bounds = array<i64: 40, 32>}, {pipeline_mode = #tpu.pipeline_mode<synchronous>, transform_indices = @transform_9, window_bounds = array<i64: 40, 1>}, {pipeline_mode = #tpu.pipeline_mode<synchronous>, transform_indices = @transform_10, window_bounds = array<i64: 8, 32>}, {pipeline_mode = #tpu.pipeline_mode<synchronous>, transform_indices = @transform_11, window_bounds = array<i64: 8, 1>}, {transform_indices = @transform_12, window_bounds = array<i64: 1>}, {transform_indices = @transform_13, window_bounds = array<i64: 1, 32, 128>}]} {
    %c0_i32 = arith.constant 0 : i32
    %0 = arith.cmpi eq, %arg1, %c0_i32 : i32
    %c0_i32_0 = arith.constant 0 : i32
    %1 = arith.cmpi eq, %arg2, %c0_i32_0 : i32
    %2 = arith.andi %0, %1 : i1
    %3 = arith.extui %2 : i1 to i32
    %c0_i32_1 = arith.constant 0 : i32
    %4 = arith.cmpi ne, %3, %c0_i32_1 : i32
    scf.if %4 {
      %cst = arith.constant 0.000000e+00 : f32
      %19 = vector.broadcast %cst : f32 to vector<32x2xf32>
      %c0 = arith.constant 0 : index
      %c0_9 = arith.constant 0 : index
      %20 = vector.load %arg17[%c0, %c0_9] : memref<32x2xf32, #tpu.memory_space<vmem>>, vector<32x2xf32>
      tpu.vector_store %arg17[%c0, %c0_9], %19 {strides = array<i32>} : memref<32x2xf32, #tpu.memory_space<vmem>>, vector<32x2xf32>,
      %cst_10 = arith.constant 0.000000e+00 : f32
      %21 = vector.broadcast %cst_10 : f32 to vector<8x1xf32>
      %c0_11 = arith.constant 0 : index
      %c0_12 = arith.constant 0 : index
      %22 = vector.load %arg19[%c0_11, %c0_12] : memref<8x1xf32, #tpu.memory_space<vmem>>, vector<8x1xf32>
      tpu.vector_store %arg19[%c0_11, %c0_12], %21 {strides = array<i32>} : memref<8x1xf32, #tpu.memory_space<vmem>>, vector<8x1xf32>,
      %cst_13 = arith.constant 0.000000e+00 : f32
      %23 = vector.broadcast %cst_13 : f32 to vector<32x1xf32>
      %c0_14 = arith.constant 0 : index
      %c0_15 = arith.constant 0 : index
      %24 = vector.load %arg20[%c0_14, %c0_15] : memref<32x1xf32, #tpu.memory_space<vmem>>, vector<32x1xf32>
      tpu.vector_store %arg20[%c0_14, %c0_15], %23 {strides = array<i32>} : memref<32x1xf32, #tpu.memory_space<vmem>>, vector<32x1xf32>,
      %cst_16 = arith.constant 0.000000e+00 : f32
      %25 = vector.broadcast %cst_16 : f32 to vector<32x8xf32>
      %c0_17 = arith.constant 0 : index
      %c0_18 = arith.constant 0 : index
      %26 = vector.load %arg21[%c0_17, %c0_18] : memref<32x8xf32, #tpu.memory_space<vmem>>, vector<32x8xf32>
      tpu.vector_store %arg21[%c0_17, %c0_18], %25 {strides = array<i32>} : memref<32x8xf32, #tpu.memory_space<vmem>>, vector<32x8xf32>,
    } else {
    }
    %c0_i32_2 = arith.constant 0 : i32
    %5 = arith.cmpi eq, %arg1, %c0_i32_2 : i32
    %6 = arith.extui %5 : i1 to i32
    %c0_i32_3 = arith.constant 0 : i32
    %7 = arith.cmpi ne, %6, %c0_i32_3 : i32
    scf.if %7 {
      %c0 = arith.constant 0 : index
      %c0_9 = arith.constant 0 : index
      %19 = vector.load %arg6[%c0, %c0_9] : memref<32x4xf32, #tpu.memory_space<vmem>>, vector<32x4xf32>
      %c0_10 = arith.constant 0 : index
      %c0_11 = arith.constant 0 : index
      %c0_12 = arith.constant 0 : index
      %20 = vector.load %arg3[%c0_10, %c0_11, %c0_12] : memref<1x4x128xf32, #tpu.memory_space<vmem>>, vector<1x4x128xf32>
      %21 = vector.shape_cast %20 : vector<1x4x128xf32> to vector<4x128xf32>
      %cst = arith.constant dense<0.000000e+00> : vector<32x128xf32>
      %22 = tpu.matmul %19, %21, %cst {dimension_numbers = #tpu.dot_dimension_numbers<[1], [0], [0], [1], [0, 0, 1, 1], [], []>} : vector<32x4xf32>, vector<4x128xf32>, vector<32x128xf32> -> vector<32x128xf32>
      %c0_13 = arith.constant 0 : index
      %c0_14 = arith.constant 0 : index
      %23 = vector.load %arg7[%c0_13, %c0_14] : memref<32x4xf32, #tpu.memory_space<vmem>>, vector<32x4xf32>
      %c0_15 = arith.constant 0 : index
      %c0_16 = arith.constant 0 : index
      %c0_17 = arith.constant 0 : index
      %24 = vector.load %arg4[%c0_15, %c0_16, %c0_17] : memref<1x4x128xf32, #tpu.memory_space<vmem>>, vector<1x4x128xf32>
      %25 = vector.shape_cast %24 : vector<1x4x128xf32> to vector<4x128xf32>
      %cst_18 = arith.constant dense<0.000000e+00> : vector<32x128xf32>
      %26 = tpu.matmul %23, %25, %cst_18 {dimension_numbers = #tpu.dot_dimension_numbers<[1], [0], [0], [1], [0, 0, 1, 1], [], []>} : vector<32x4xf32>, vector<4x128xf32>, vector<32x128xf32> -> vector<32x128xf32>
      %27 = arith.addf %22, %26 : vector<32x128xf32>
      %c0_19 = arith.constant 0 : index
      %c0_20 = arith.constant 0 : index
      %28 = vector.load %arg8[%c0_19, %c0_20] : memref<32x8xf32, #tpu.memory_space<vmem>>, vector<32x8xf32>
      %c0_21 = arith.constant 0 : index
      %c0_22 = arith.constant 0 : index
      %c0_23 = arith.constant 0 : index
      %29 = vector.load %arg5[%c0_21, %c0_22, %c0_23] : memref<1x8x128xf32, #tpu.memory_space<vmem>>, vector<1x8x128xf32>
      %30 = vector.shape_cast %29 : vector<1x8x128xf32> to vector<8x128xf32>
      %cst_24 = arith.constant dense<0.000000e+00> : vector<32x128xf32>
      %31 = tpu.matmul %28, %30, %cst_24 {dimension_numbers = #tpu.dot_dimension_numbers<[1], [0], [0], [1], [0, 0, 1, 1], [], []>} : vector<32x8xf32>, vector<8x128xf32>, vector<32x128xf32> -> vector<32x128xf32>
      %32 = arith.addf %27, %31 : vector<32x128xf32>
      %c0_25 = arith.constant 0 : index
      %c0_26 = arith.constant 0 : index
      %33 = vector.load %arg17[%c0_25, %c0_26] : memref<32x2xf32, #tpu.memory_space<vmem>>, vector<32x2xf32>
      %cst_27 = arith.constant dense<0.000000e+00> : vector<32xf32>
      %34 = vector.multi_reduction <add>, %32, %cst_27 [1] : vector<32x128xf32> to vector<32xf32>
      %35 = vector.shape_cast %34 : vector<32xf32> to vector<32x1xf32>
      %36 = arith.mulf %32, %32 : vector<32x128xf32>
      %cst_28 = arith.constant dense<0.000000e+00> : vector<32xf32>
      %37 = vector.multi_reduction <add>, %36, %cst_28 [1] : vector<32x128xf32> to vector<32xf32>
      %38 = vector.shape_cast %37 : vector<32xf32> to vector<32x1xf32>
      %39 = tpu.concatenate %35, %38 in 1 : vector<32x1xf32>, vector<32x1xf32> -> vector<32x2xf32>
      %40 = arith.addf %33, %39 : vector<32x2xf32>
      %c0_29 = arith.constant 0 : index
      %c0_30 = arith.constant 0 : index
      %41 = vector.load %arg17[%c0_29, %c0_30] : memref<32x2xf32, #tpu.memory_space<vmem>>, vector<32x2xf32>
      tpu.vector_store %arg17[%c0_29, %c0_30], %40 {strides = array<i32>} : memref<32x2xf32, #tpu.memory_space<vmem>>, vector<32x2xf32>,
    } else {
    }
    %c1_i32 = arith.constant 1 : i32
    %8 = arith.cmpi eq, %arg1, %c1_i32 : i32
    %c0_i32_4 = arith.constant 0 : i32
    %9 = arith.cmpi eq, %arg2, %c0_i32_4 : i32
    %10 = arith.andi %8, %9 : i1
    %11 = arith.extui %10 : i1 to i32
    %c0_i32_5 = arith.constant 0 : i32
    %12 = arith.cmpi ne, %11, %c0_i32_5 : i32
    scf.if %12 {
      %c0 = arith.constant 0 : index
      %c0_9 = arith.constant 0 : index
      %19 = vector.load %arg9[%c0, %c0_9] : memref<32x16xf32, #tpu.memory_space<vmem>>, vector<32x16xf32>
      %c0_10 = arith.constant 0 : index
      %c0_11 = arith.constant 0 : index
      %20 = vector.load %arg17[%c0_10, %c0_11] : memref<32x2xf32, #tpu.memory_space<vmem>>, vector<32x2xf32>
      %cst = arith.constant dense<0.000000e+00> : vector<16x2xf32>
      %21 = tpu.matmul %19, %20, %cst {dimension_numbers = #tpu.dot_dimension_numbers<[0], [0], [1], [1], [0, 1, 1, 1], [], []>} : vector<32x16xf32>, vector<32x2xf32>, vector<16x2xf32> -> vector<16x2xf32>
      %cst_12 = arith.constant 1.000000e+00 : f32
      %cst_13 = arith.constant 5.120000e+02 : f32
      %22 = arith.divf %cst_12, %cst_13 : f32
      %23 = vector.extract_strided_slice %21 {offsets = [0, 0], sizes = [16, 1], strides = [1, 1]} : vector<16x2xf32> to vector<16x1xf32>
      %24 = vector.broadcast %22 : f32 to vector<16x1xf32>
      %25 = arith.mulf %23, %24 : vector<16x1xf32>
      %26 = vector.extract_strided_slice %21 {offsets = [0, 1], sizes = [16, 1], strides = [1, 1]} : vector<16x2xf32> to vector<16x1xf32>
      %27 = vector.broadcast %22 : f32 to vector<16x1xf32>
      %28 = arith.mulf %26, %27 : vector<16x1xf32>
      %29 = arith.mulf %25, %25 : vector<16x1xf32>
      %30 = arith.subf %28, %29 : vector<16x1xf32>
      %cst_14 = arith.constant 9.99999974E-6 : f32
      %31 = vector.broadcast %cst_14 : f32 to vector<16x1xf32>
      %32 = arith.addf %30, %31 : vector<16x1xf32>
      %33 = math.rsqrt %32 : vector<16x1xf32>
      %c0_15 = arith.constant 0 : index
      %c0_16 = arith.constant 0 : index
      %34 = vector.load %arg9[%c0_15, %c0_16] : memref<32x16xf32, #tpu.memory_space<vmem>>, vector<32x16xf32>
      %35 = tpu.concatenate %25, %33 in 1 : vector<16x1xf32>, vector<16x1xf32> -> vector<16x2xf32>
      %cst_17 = arith.constant dense<0.000000e+00> : vector<32x2xf32>
      %36 = tpu.matmul %34, %35, %cst_17 {dimension_numbers = #tpu.dot_dimension_numbers<[1], [0], [0], [1], [0, 0, 1, 1], [], []>} : vector<32x16xf32>, vector<16x2xf32>, vector<32x2xf32> -> vector<32x2xf32>
      %37 = vector.extract_strided_slice %36 {offsets = [0, 1], sizes = [32, 1], strides = [1, 1]} : vector<32x2xf32> to vector<32x1xf32>
      %c0_18 = arith.constant 0 : index
      %c0_19 = arith.constant 0 : index
      %38 = vector.load %arg10[%c0_18, %c0_19] : memref<32x2xf32, #tpu.memory_space<vmem>>, vector<32x1xf32>
      %39 = arith.mulf %37, %38 : vector<32x1xf32>
      %c0_20 = arith.constant 0 : index
      %c1 = arith.constant 1 : index
      %40 = vector.load %arg10[%c0_20, %c1] : memref<32x2xf32, #tpu.memory_space<vmem>>, vector<32x1xf32>
      %41 = vector.extract_strided_slice %36 {offsets = [0, 0], sizes = [32, 1], strides = [1, 1]} : vector<32x2xf32> to vector<32x1xf32>
      %42 = arith.mulf %41, %39 : vector<32x1xf32>
      %43 = arith.subf %40, %42 : vector<32x1xf32>
      %44 = tpu.concatenate %39, %43 in 1 : vector<32x1xf32>, vector<32x1xf32> -> vector<32x2xf32>
      %c0_21 = arith.constant 0 : index
      %c0_22 = arith.constant 0 : index
      %45 = vector.load %arg18[%c0_21, %c0_22] : memref<32x2xf32, #tpu.memory_space<vmem>>, vector<32x2xf32>
      tpu.vector_store %arg18[%c0_21, %c0_22], %44 {strides = array<i32>} : memref<32x2xf32, #tpu.memory_space<vmem>>, vector<32x2xf32>,
    } else {
    }
    %c1_i32_6 = arith.constant 1 : i32
    %13 = arith.cmpi eq, %arg1, %c1_i32_6 : i32
    %14 = arith.extui %13 : i1 to i32
    %c0_i32_7 = arith.constant 0 : i32
    %15 = arith.cmpi ne, %14, %c0_i32_7 : i32
    scf.if %15 {
      %c0 = arith.constant 0 : index
      %c0_9 = arith.constant 0 : index
      %19 = vector.load %arg6[%c0, %c0_9] : memref<32x4xf32, #tpu.memory_space<vmem>>, vector<32x4xf32>
      %c0_10 = arith.constant 0 : index
      %c0_11 = arith.constant 0 : index
      %c0_12 = arith.constant 0 : index
      %20 = vector.load %arg3[%c0_10, %c0_11, %c0_12] : memref<1x4x128xf32, #tpu.memory_space<vmem>>, vector<1x4x128xf32>
      %21 = vector.shape_cast %20 : vector<1x4x128xf32> to vector<4x128xf32>
      %cst = arith.constant dense<0.000000e+00> : vector<32x128xf32>
      %22 = tpu.matmul %19, %21, %cst {dimension_numbers = #tpu.dot_dimension_numbers<[1], [0], [0], [1], [0, 0, 1, 1], [], []>} : vector<32x4xf32>, vector<4x128xf32>, vector<32x128xf32> -> vector<32x128xf32>
      %c0_13 = arith.constant 0 : index
      %c0_14 = arith.constant 0 : index
      %23 = vector.load %arg7[%c0_13, %c0_14] : memref<32x4xf32, #tpu.memory_space<vmem>>, vector<32x4xf32>
      %c0_15 = arith.constant 0 : index
      %c0_16 = arith.constant 0 : index
      %c0_17 = arith.constant 0 : index
      %24 = vector.load %arg4[%c0_15, %c0_16, %c0_17] : memref<1x4x128xf32, #tpu.memory_space<vmem>>, vector<1x4x128xf32>
      %25 = vector.shape_cast %24 : vector<1x4x128xf32> to vector<4x128xf32>
      %cst_18 = arith.constant dense<0.000000e+00> : vector<32x128xf32>
      %26 = tpu.matmul %23, %25, %cst_18 {dimension_numbers = #tpu.dot_dimension_numbers<[1], [0], [0], [1], [0, 0, 1, 1], [], []>} : vector<32x4xf32>, vector<4x128xf32>, vector<32x128xf32> -> vector<32x128xf32>
      %27 = arith.addf %22, %26 : vector<32x128xf32>
      %c0_19 = arith.constant 0 : index
      %c0_20 = arith.constant 0 : index
      %28 = vector.load %arg8[%c0_19, %c0_20] : memref<32x8xf32, #tpu.memory_space<vmem>>, vector<32x8xf32>
      %c0_21 = arith.constant 0 : index
      %c0_22 = arith.constant 0 : index
      %c0_23 = arith.constant 0 : index
      %29 = vector.load %arg5[%c0_21, %c0_22, %c0_23] : memref<1x8x128xf32, #tpu.memory_space<vmem>>, vector<1x8x128xf32>
      %30 = vector.shape_cast %29 : vector<1x8x128xf32> to vector<8x128xf32>
      %cst_24 = arith.constant dense<0.000000e+00> : vector<32x128xf32>
      %31 = tpu.matmul %28, %30, %cst_24 {dimension_numbers = #tpu.dot_dimension_numbers<[1], [0], [0], [1], [0, 0, 1, 1], [], []>} : vector<32x8xf32>, vector<8x128xf32>, vector<32x128xf32> -> vector<32x128xf32>
      %32 = arith.addf %27, %31 : vector<32x128xf32>
      %c0_25 = arith.constant 0 : index
      %c0_26 = arith.constant 0 : index
      %33 = vector.load %arg18[%c0_25, %c0_26] : memref<32x2xf32, #tpu.memory_space<vmem>>, vector<32x1xf32>
      %34 = vector.broadcast %33 : vector<32x1xf32> to vector<32x128xf32>
      %35 = arith.mulf %32, %34 : vector<32x128xf32>
      %c0_27 = arith.constant 0 : index
      %c1 = arith.constant 1 : index
      %36 = vector.load %arg18[%c0_27, %c1] : memref<32x2xf32, #tpu.memory_space<vmem>>, vector<32x1xf32>
      %37 = vector.broadcast %36 : vector<32x1xf32> to vector<32x128xf32>
      %38 = arith.addf %35, %37 : vector<32x128xf32>
      %cst_28 = arith.constant 0.000000e+00 : f32
      %39 = vector.broadcast %cst_28 : f32 to vector<32x128xf32>
      %40 = arith.maximumf %38, %39 : vector<32x128xf32>
      %c0_29 = arith.constant 0 : index
      %c0_30 = arith.constant 0 : index
      %41 = vector.load %arg11[%c0_29, %c0_30] : memref<40x32xf32, #tpu.memory_space<vmem>>, vector<40x32xf32>
      %cst_31 = arith.constant dense<0.000000e+00> : vector<40x128xf32>
      %42 = tpu.matmul %41, %40, %cst_31 {dimension_numbers = #tpu.dot_dimension_numbers<[1], [0], [0], [1], [0, 0, 1, 1], [], []>} : vector<40x32xf32>, vector<32x128xf32>, vector<40x128xf32> -> vector<40x128xf32>
      %c0_32 = arith.constant 0 : index
      %c0_33 = arith.constant 0 : index
      %43 = vector.load %arg12[%c0_32, %c0_33] : memref<40x1xf32, #tpu.memory_space<vmem>>, vector<40x1xf32>
      %44 = vector.broadcast %43 : vector<40x1xf32> to vector<40x128xf32>
      %45 = arith.addf %42, %44 : vector<40x128xf32>
      %46 = vector.extract_strided_slice %45 {offsets = [0, 0], sizes = [8, 128], strides = [1, 1]} : vector<40x128xf32> to vector<8x128xf32>
      %47 = vector.extract_strided_slice %45 {offsets = [8, 0], sizes = [32, 128], strides = [1, 1]} : vector<40x128xf32> to vector<32x128xf32>
      %48 = arith.mulf %46, %46 : vector<8x128xf32>
      %cst_34 = arith.constant dense<0.000000e+00> : vector<128xf32>
      %49 = vector.multi_reduction <add>, %48, %cst_34 [0] : vector<8x128xf32> to vector<128xf32>
      %50 = vector.shape_cast %49 : vector<128xf32> to vector<1x128xf32>
      %51 = math.rsqrt %50 : vector<1x128xf32>
      %52 = vector.broadcast %51 : vector<1x128xf32> to vector<8x128xf32>
      %53 = arith.mulf %46, %52 : vector<8x128xf32>
      %c0_35 = arith.constant 0 : index
      %c0_36 = arith.constant 0 : index
      %54 = vector.load %arg19[%c0_35, %c0_36] : memref<8x1xf32, #tpu.memory_space<vmem>>, vector<8x1xf32>
      %cst_37 = arith.constant dense<0.000000e+00> : vector<8xf32>
      %55 = vector.multi_reduction <add>, %53, %cst_37 [1] : vector<8x128xf32> to vector<8xf32>
      %56 = vector.shape_cast %55 : vector<8xf32> to vector<8x1xf32>
      %57 = arith.addf %54, %56 : vector<8x1xf32>
      %c0_38 = arith.constant 0 : index
      %c0_39 = arith.constant 0 : index
      %58 = vector.load %arg19[%c0_38, %c0_39] : memref<8x1xf32, #tpu.memory_space<vmem>>, vector<8x1xf32>
      tpu.vector_store %arg19[%c0_38, %c0_39], %57 {strides = array<i32>} : memref<8x1xf32, #tpu.memory_space<vmem>>, vector<8x1xf32>,
      %c0_40 = arith.constant 0 : index
      %c0_41 = arith.constant 0 : index
      %59 = vector.load %arg20[%c0_40, %c0_41] : memref<32x1xf32, #tpu.memory_space<vmem>>, vector<32x1xf32>
      %cst_42 = arith.constant dense<0.000000e+00> : vector<32xf32>
      %60 = vector.multi_reduction <add>, %47, %cst_42 [1] : vector<32x128xf32> to vector<32xf32>
      %61 = vector.shape_cast %60 : vector<32xf32> to vector<32x1xf32>
      %62 = arith.addf %59, %61 : vector<32x1xf32>
      %c0_43 = arith.constant 0 : index
      %c0_44 = arith.constant 0 : index
      %63 = vector.load %arg20[%c0_43, %c0_44] : memref<32x1xf32, #tpu.memory_space<vmem>>, vector<32x1xf32>
      tpu.vector_store %arg20[%c0_43, %c0_44], %62 {strides = array<i32>} : memref<32x1xf32, #tpu.memory_space<vmem>>, vector<32x1xf32>,
      %c0_45 = arith.constant 0 : index
      %c0_46 = arith.constant 0 : index
      %64 = vector.load %arg21[%c0_45, %c0_46] : memref<32x8xf32, #tpu.memory_space<vmem>>, vector<32x8xf32>
      %cst_47 = arith.constant dense<0.000000e+00> : vector<32x8xf32>
      %65 = tpu.matmul %47, %53, %cst_47 {dimension_numbers = #tpu.dot_dimension_numbers<[1], [1], [0], [0], [0, 0, 1, 0], [], []>} : vector<32x128xf32>, vector<8x128xf32>, vector<32x8xf32> -> vector<32x8xf32>
      %66 = arith.addf %64, %65 : vector<32x8xf32>
      %c0_48 = arith.constant 0 : index
      %c0_49 = arith.constant 0 : index
      %67 = vector.load %arg21[%c0_48, %c0_49] : memref<32x8xf32, #tpu.memory_space<vmem>>, vector<32x8xf32>
      tpu.vector_store %arg21[%c0_48, %c0_49], %66 {strides = array<i32>} : memref<32x8xf32, #tpu.memory_space<vmem>>, vector<32x8xf32>,
    } else {
    }
    %c2_i32 = arith.constant 2 : i32
    %16 = arith.cmpi eq, %arg1, %c2_i32 : i32
    %17 = arith.extui %16 : i1 to i32
    %c0_i32_8 = arith.constant 0 : i32
    %18 = arith.cmpi ne, %17, %c0_i32_8 : i32
    scf.if %18 {
      %c0 = arith.constant 0 : index
      %c0_9 = arith.constant 0 : index
      %19 = vector.load %arg6[%c0, %c0_9] : memref<32x4xf32, #tpu.memory_space<vmem>>, vector<32x4xf32>
      %c0_10 = arith.constant 0 : index
      %c0_11 = arith.constant 0 : index
      %c0_12 = arith.constant 0 : index
      %20 = vector.load %arg3[%c0_10, %c0_11, %c0_12] : memref<1x4x128xf32, #tpu.memory_space<vmem>>, vector<1x4x128xf32>
      %21 = vector.shape_cast %20 : vector<1x4x128xf32> to vector<4x128xf32>
      %cst = arith.constant dense<0.000000e+00> : vector<32x128xf32>
      %22 = tpu.matmul %19, %21, %cst {dimension_numbers = #tpu.dot_dimension_numbers<[1], [0], [0], [1], [0, 0, 1, 1], [], []>} : vector<32x4xf32>, vector<4x128xf32>, vector<32x128xf32> -> vector<32x128xf32>
      %c0_13 = arith.constant 0 : index
      %c0_14 = arith.constant 0 : index
      %23 = vector.load %arg7[%c0_13, %c0_14] : memref<32x4xf32, #tpu.memory_space<vmem>>, vector<32x4xf32>
      %c0_15 = arith.constant 0 : index
      %c0_16 = arith.constant 0 : index
      %c0_17 = arith.constant 0 : index
      %24 = vector.load %arg4[%c0_15, %c0_16, %c0_17] : memref<1x4x128xf32, #tpu.memory_space<vmem>>, vector<1x4x128xf32>
      %25 = vector.shape_cast %24 : vector<1x4x128xf32> to vector<4x128xf32>
      %cst_18 = arith.constant dense<0.000000e+00> : vector<32x128xf32>
      %26 = tpu.matmul %23, %25, %cst_18 {dimension_numbers = #tpu.dot_dimension_numbers<[1], [0], [0], [1], [0, 0, 1, 1], [], []>} : vector<32x4xf32>, vector<4x128xf32>, vector<32x128xf32> -> vector<32x128xf32>
      %27 = arith.addf %22, %26 : vector<32x128xf32>
      %c0_19 = arith.constant 0 : index
      %c0_20 = arith.constant 0 : index
      %28 = vector.load %arg8[%c0_19, %c0_20] : memref<32x8xf32, #tpu.memory_space<vmem>>, vector<32x8xf32>
      %c0_21 = arith.constant 0 : index
      %c0_22 = arith.constant 0 : index
      %c0_23 = arith.constant 0 : index
      %29 = vector.load %arg5[%c0_21, %c0_22, %c0_23] : memref<1x8x128xf32, #tpu.memory_space<vmem>>, vector<1x8x128xf32>
      %30 = vector.shape_cast %29 : vector<1x8x128xf32> to vector<8x128xf32>
      %cst_24 = arith.constant dense<0.000000e+00> : vector<32x128xf32>
      %31 = tpu.matmul %28, %30, %cst_24 {dimension_numbers = #tpu.dot_dimension_numbers<[1], [0], [0], [1], [0, 0, 1, 1], [], []>} : vector<32x8xf32>, vector<8x128xf32>, vector<32x128xf32> -> vector<32x128xf32>
      %32 = arith.addf %27, %31 : vector<32x128xf32>
      %c0_25 = arith.constant 0 : index
      %c0_26 = arith.constant 0 : index
      %33 = vector.load %arg18[%c0_25, %c0_26] : memref<32x2xf32, #tpu.memory_space<vmem>>, vector<32x1xf32>
      %34 = vector.broadcast %33 : vector<32x1xf32> to vector<32x128xf32>
      %35 = arith.mulf %32, %34 : vector<32x128xf32>
      %c0_27 = arith.constant 0 : index
      %c1 = arith.constant 1 : index
      %36 = vector.load %arg18[%c0_27, %c1] : memref<32x2xf32, #tpu.memory_space<vmem>>, vector<32x1xf32>
      %37 = vector.broadcast %36 : vector<32x1xf32> to vector<32x128xf32>
      %38 = arith.addf %35, %37 : vector<32x128xf32>
      %cst_28 = arith.constant 0.000000e+00 : f32
      %39 = vector.broadcast %cst_28 : f32 to vector<32x128xf32>
      %40 = arith.maximumf %38, %39 : vector<32x128xf32>
      %c0_29 = arith.constant 0 : index
      %c0_30 = arith.constant 0 : index
      %41 = vector.load %arg13[%c0_29, %c0_30] : memref<8x32xf32, #tpu.memory_space<vmem>>, vector<8x32xf32>
      %cst_31 = arith.constant dense<0.000000e+00> : vector<8x128xf32>
      %42 = tpu.matmul %41, %40, %cst_31 {dimension_numbers = #tpu.dot_dimension_numbers<[1], [0], [0], [1], [0, 0, 1, 1], [], []>} : vector<8x32xf32>, vector<32x128xf32>, vector<8x128xf32> -> vector<8x128xf32>
      %c0_32 = arith.constant 0 : index
      %c0_33 = arith.constant 0 : index
      %43 = vector.load %arg14[%c0_32, %c0_33] : memref<8x1xf32, #tpu.memory_space<vmem>>, vector<8x1xf32>
      %44 = vector.broadcast %43 : vector<8x1xf32> to vector<8x128xf32>
      %45 = arith.addf %42, %44 : vector<8x128xf32>
      %46 = arith.mulf %45, %45 : vector<8x128xf32>
      %cst_34 = arith.constant dense<0.000000e+00> : vector<128xf32>
      %47 = vector.multi_reduction <add>, %46, %cst_34 [0] : vector<8x128xf32> to vector<128xf32>
      %48 = vector.shape_cast %47 : vector<128xf32> to vector<1x128xf32>
      %49 = math.rsqrt %48 : vector<1x128xf32>
      %50 = vector.broadcast %49 : vector<1x128xf32> to vector<8x128xf32>
      %51 = arith.mulf %45, %50 : vector<8x128xf32>
      %c0_35 = arith.constant 0 : index
      %c0_36 = arith.constant 0 : index
      %52 = vector.load %arg19[%c0_35, %c0_36] : memref<8x1xf32, #tpu.memory_space<vmem>>, vector<8x1xf32>
      %cst_37 = arith.constant 9.99999997E-7 : f32
      %53 = vector.broadcast %cst_37 : f32 to vector<8x1xf32>
      %54 = arith.addf %52, %53 : vector<8x1xf32>
      %55 = vector.broadcast %54 : vector<8x1xf32> to vector<8x128xf32>
      %56 = arith.mulf %51, %55 : vector<8x128xf32>
      %cst_38 = arith.constant dense<0.000000e+00> : vector<128xf32>
      %57 = vector.multi_reduction <add>, %56, %cst_38 [0] : vector<8x128xf32> to vector<128xf32>
      %58 = vector.shape_cast %57 : vector<128xf32> to vector<1x128xf32>
      %cst_39 = arith.constant 2.560000e+02 : f32
      %59 = vector.broadcast %cst_39 : f32 to vector<1x128xf32>
      %60 = arith.addf %59, %58 : vector<1x128xf32>
      %cst_40 = arith.constant 1.000000e+00 : f32
      %61 = vector.broadcast %cst_40 : f32 to vector<1x128xf32>
      %62 = arith.divf %61, %60 : vector<1x128xf32>
      %c0_41 = arith.constant 0 : index
      %c0_42 = arith.constant 0 : index
      %63 = vector.load %arg21[%c0_41, %c0_42] : memref<32x8xf32, #tpu.memory_space<vmem>>, vector<32x8xf32>
      %cst_43 = arith.constant dense<0.000000e+00> : vector<32x128xf32>
      %64 = tpu.matmul %63, %51, %cst_43 {dimension_numbers = #tpu.dot_dimension_numbers<[1], [0], [0], [1], [0, 0, 1, 1], [], []>} : vector<32x8xf32>, vector<8x128xf32>, vector<32x128xf32> -> vector<32x128xf32>
      %c0_44 = arith.constant 0 : index
      %65 = memref.load %arg15[%c0_44] : memref<1xf32, #tpu.memory_space<smem>>
      %c0_45 = arith.constant 0 : index
      %c0_46 = arith.constant 0 : index
      %66 = vector.load %arg20[%c0_45, %c0_46] : memref<32x1xf32, #tpu.memory_space<vmem>>, vector<32x1xf32>
      %67 = vector.broadcast %66 : vector<32x1xf32> to vector<32x128xf32>
      %68 = arith.addf %67, %64 : vector<32x128xf32>
      %69 = vector.broadcast %62 : vector<1x128xf32> to vector<32x128xf32>
      %70 = arith.mulf %68, %69 : vector<32x128xf32>
      %71 = vector.broadcast %65 : f32 to vector<32x128xf32>
      %72 = arith.mulf %71, %70 : vector<32x128xf32>
      %73 = arith.addf %72, %40 : vector<32x128xf32>
      %c0_47 = arith.constant 0 : index
      %c0_48 = arith.constant 0 : index
      %c0_49 = arith.constant 0 : index
      %74 = vector.load %arg16[%c0_47, %c0_48, %c0_49] : memref<1x32x128xf32, #tpu.memory_space<vmem>>, vector<1x32x128xf32>
      %75 = vector.shape_cast %74 : vector<1x32x128xf32> to vector<32x128xf32>
      %76 = vector.shape_cast %73 : vector<32x128xf32> to vector<1x32x128xf32>
      tpu.vector_store %arg16[%c0_47, %c0_48, %c0_49], %76 {strides = array<i32>} : memref<1x32x128xf32, #tpu.memory_space<vmem>>, vector<1x32x128xf32>,
    } else {
    }
    return
  }
  func.func @transform_0(%arg0: i32, %arg1: i32, %arg2: i32) -> (i32, i32, i32) {
    %c0_i32 = arith.constant 0 : i32
    %c0_i32_0 = arith.constant 0 : i32
    return %arg0, %c0_i32, %arg2 : i32, i32, i32
  }
  func.func @transform_1(%arg0: i32, %arg1: i32, %arg2: i32) -> (i32, i32, i32) {
    %c0_i32 = arith.constant 0 : i32
    %c0_i32_0 = arith.constant 0 : i32
    return %arg0, %c0_i32, %arg2 : i32, i32, i32
  }
  func.func @transform_2(%arg0: i32, %arg1: i32, %arg2: i32) -> (i32, i32, i32) {
    %c0_i32 = arith.constant 0 : i32
    %c0_i32_0 = arith.constant 0 : i32
    return %arg0, %c0_i32, %arg2 : i32, i32, i32
  }
  func.func @transform_3(%arg0: i32, %arg1: i32, %arg2: i32) -> (i32, i32) {
    %c0_i32 = arith.constant 0 : i32
    %c0_i32_0 = arith.constant 0 : i32
    %c0_i32_1 = arith.constant 0 : i32
    return %c0_i32, %c0_i32_0 : i32, i32
  }
  func.func @transform_4(%arg0: i32, %arg1: i32, %arg2: i32) -> (i32, i32) {
    %c0_i32 = arith.constant 0 : i32
    %c0_i32_0 = arith.constant 0 : i32
    %c0_i32_1 = arith.constant 0 : i32
    return %c0_i32, %c0_i32_0 : i32, i32
  }
  func.func @transform_5(%arg0: i32, %arg1: i32, %arg2: i32) -> (i32, i32) {
    %c0_i32 = arith.constant 0 : i32
    %c0_i32_0 = arith.constant 0 : i32
    %c0_i32_1 = arith.constant 0 : i32
    return %c0_i32, %c0_i32_0 : i32, i32
  }
  func.func @transform_6(%arg0: i32, %arg1: i32, %arg2: i32) -> (i32, i32) {
    %c0_i32 = arith.constant 0 : i32
    %c0_i32_0 = arith.constant 0 : i32
    %c0_i32_1 = arith.constant 0 : i32
    return %c0_i32, %c0_i32_0 : i32, i32
  }
  func.func @transform_7(%arg0: i32, %arg1: i32, %arg2: i32) -> (i32, i32) {
    %c0_i32 = arith.constant 0 : i32
    %c0_i32_0 = arith.constant 0 : i32
    %c0_i32_1 = arith.constant 0 : i32
    return %c0_i32, %c0_i32_0 : i32, i32
  }
  func.func @transform_8(%arg0: i32, %arg1: i32, %arg2: i32) -> (i32, i32) {
    %c0_i32 = arith.constant 0 : i32
    %c0_i32_0 = arith.constant 0 : i32
    %c0_i32_1 = arith.constant 0 : i32
    return %c0_i32, %c0_i32_0 : i32, i32
  }
  func.func @transform_9(%arg0: i32, %arg1: i32, %arg2: i32) -> (i32, i32) {
    %c0_i32 = arith.constant 0 : i32
    %c0_i32_0 = arith.constant 0 : i32
    %c0_i32_1 = arith.constant 0 : i32
    return %c0_i32, %c0_i32_0 : i32, i32
  }
  func.func @transform_10(%arg0: i32, %arg1: i32, %arg2: i32) -> (i32, i32) {
    %c0_i32 = arith.constant 0 : i32
    %c0_i32_0 = arith.constant 0 : i32
    %c0_i32_1 = arith.constant 0 : i32
    return %c0_i32, %c0_i32_0 : i32, i32
  }
  func.func @transform_11(%arg0: i32, %arg1: i32, %arg2: i32) -> (i32, i32) {
    %c0_i32 = arith.constant 0 : i32
    %c0_i32_0 = arith.constant 0 : i32
    %c0_i32_1 = arith.constant 0 : i32
    return %c0_i32, %c0_i32_0 : i32, i32
  }
  func.func @transform_12(%arg0: i32, %arg1: i32, %arg2: i32) -> i32 {
    %c0_i32 = arith.constant 0 : i32
    %c0_i32_0 = arith.constant 0 : i32
    return %c0_i32 : i32
  }
  func.func @transform_13(%arg0: i32, %arg1: i32, %arg2: i32) -> (i32, i32, i32) {
    %c2_i32 = arith.constant 2 : i32
    %0 = arith.cmpi eq, %arg1, %c2_i32 : i32
    %c0_i32 = arith.constant 0 : i32
    %1 = arith.select %0, %arg2, %c0_i32 : i32
    %c0_i32_0 = arith.constant 0 : i32
    %c0_i32_1 = arith.constant 0 : i32
    return %arg0, %c0_i32_0, %1 : i32, i32, i32
  }
}

</mosaic_0001>

<llo_original>
// kernel: tpu_custom_call.1
$region0: #{tpu_custom_call.1}
  #allocation0 [shape = 'u32[]', space=smem, size = 0x4, offset = 0x4, fixed_abs, tag = 'smem constant byte address 0x4 - core index']
  #allocation1 [shape = 'u32[144,128]{1,0:T(1,128)}', space=vmem, size = 0x12000, scoped, tag = 'internal scratch']
  #allocation2 [shape = 'f32[32,2]{1,0:T(8,128)}', space=vmem, size = 0x4000, scoped, tag = 'scratch operand']
  #allocation3 [shape = 'f32[32,2]{1,0:T(8,128)}', space=vmem, size = 0x4000, scoped, tag = 'scratch operand']
  #allocation4 [shape = 'f32[8,1]{1,0:T(8,128)}', space=vmem, size = 0x1000, scoped, tag = 'scratch operand']
  #allocation5 [shape = 'f32[32,1]{1,0:T(8,128)}', space=vmem, size = 0x4000, scoped, tag = 'scratch operand']
  #allocation6 [shape = 'f32[32,8]{1,0:T(8,128)}', space=vmem, size = 0x4000, scoped, tag = 'scratch operand']
  #allocation7 [shape = 'f32[1]{0:T(128)S(6)}', space=smem, size = 0x200, scoped, tag = 'scoped memory for tpu_custom_call.1']
  %s0 = inlined_call_operand.vmem [shape: f32[2,4,256], index: 0, kind: input, shape index: {}]
  %s1 = inlined_call_operand.vmem [shape: f32[2,4,256], index: 1, kind: input, shape index: {}]
  %s2 = inlined_call_operand.vmem [shape: f32[2,8,256], index: 2, kind: input, shape index: {}]
  %s3 = inlined_call_operand.vmem [shape: f32[32,4], index: 3, kind: input, shape index: {}]
  %s4 = inlined_call_operand.vmem [shape: f32[32,4], index: 4, kind: input, shape index: {}]
  %s5 = inlined_call_operand.vmem [shape: f32[32,8], index: 5, kind: input, shape index: {}]
  %s6 = inlined_call_operand.vmem [shape: f32[32,16], index: 6, kind: input, shape index: {}]
  %s7 = inlined_call_operand.vmem [shape: f32[32,2], index: 7, kind: input, shape index: {}]
  %s8 = inlined_call_operand.vmem [shape: f32[40,32], index: 8, kind: input, shape index: {}]
  %s9 = inlined_call_operand.vmem [shape: f32[40,1], index: 9, kind: input, shape index: {}]
  %s10 = inlined_call_operand.vmem [shape: f32[8,32], index: 10, kind: input, shape index: {}]
  %s11 = inlined_call_operand.vmem [shape: f32[8,1], index: 11, kind: input, shape index: {}]
  %s12 = inlined_call_operand.<no memory space> [shape: f32[1], index: 12, kind: input, shape index: {}]
  %s13 = inlined_call_operand.hbm [shape: f32[2,32,256], index: 13, kind: output, shape index: {}]
  %s14 = sld [smem:[#allocation0]]
  $region105: #{tpu_custom_call.1} parent=0
    _
  %s16 = ssub.s32 1, %s14
  %s17 = scalar_select 0, %s16, %s14
  %18 = sst [smem:[#allocation7]] %s12
  $region1: #{tpu_custom_call.1} parent=0
    #allocation8 [shape = 'u8[32768]{0}', space=vmem, size = 0x8000, scoped, tag = 'output window, operand 0']
    #allocation9 [shape = 's32[2]{0}', space=sflag, size = 0x8, scoped, tag = 'scoped memory for tpu_custom_call.1']
    %19 = vsyncpa [#allocation9], 0
    %s20 = scalar_lea.sflag [#allocation9], 1
    %21 = vsyncpa %s20, 0
    loop: start=0, step=1, limit=14
    $region2: #{tpu_custom_call.1} parent=1 // loop_pre_header
      _
    $region3: #{tpu_custom_call.1} parent=1 // loop_header
      %s23 = sphi 0, %s27
      %p24 = scmp.ge.s32.totalorder %s23, 14
      %s30 = sphi 0, %s49
      %s31 = sphi 0, %s45
      %s32 = sphi 0, %s41
      %s33 = sphi 0, %s30
      %s34 = sphi 0, %s31
      %s35 = sphi 0, %s32
      %s36 = sphi 0, %s33
      %s37 = sphi 0, %s34
      %s38 = sphi 0, %s35
      %s54 = sphi 0, %s56
      %s57 = sphi 0, %s54
      %s58 = sphi 0, %s57
      %s74 = sphi 0, %s58
      %s82 = sphi 0, %s84
      %s85 = sphi 0, %s82
      %s86 = sphi 0, %s85
      %s102 = sphi 0, %s86
      %s110 = sphi 0, %s112
      %s113 = sphi 0, %s110
      %s114 = sphi 0, %s113
      %s130 = sphi 0, %s114
      %s134 = sphi 0, %s134
      %s136 = sphi 0, %s134
      %s137 = sphi 0, %s136
      %s151 = sphi 0, %s137
      %s155 = sphi 0, %s155
      %s157 = sphi 0, %s155
      %s158 = sphi 0, %s157
      %s172 = sphi 0, %s158
      %s176 = sphi 0, %s176
      %s178 = sphi 0, %s176
      %s179 = sphi 0, %s178
      %s193 = sphi 0, %s179
      %s197 = sphi 0, %s197
      %s199 = sphi 0, %s197
      %s200 = sphi 0, %s199
      %s214 = sphi 0, %s200
      %s218 = sphi 0, %s218
      %s220 = sphi 0, %s218
      %s221 = sphi 0, %s220
      %s235 = sphi 0, %s221
      %s239 = sphi 0, %s239
      %s241 = sphi 0, %s239
      %s242 = sphi 0, %s241
      %s256 = sphi 0, %s242
      %s260 = sphi 0, %s260
      %s262 = sphi 0, %s260
      %s263 = sphi 0, %s262
      %s277 = sphi 0, %s263
      %s281 = sphi 0, %s281
      %s283 = sphi 0, %s281
      %s284 = sphi 0, %s283
      %s298 = sphi 0, %s284
      %s302 = sphi 0, %s302
      %s304 = sphi 0, %s302
      %s305 = sphi 0, %s304
      %s319 = sphi 0, %s305
      %s323 = sphi 0, %s323
      %s325 = sphi 0, %s323
      %s326 = sphi 0, %s325
      %s340 = sphi 0, %s326
      %s352 = sphi 0, %s354
      %s355 = sphi 0, %s352
      %s356 = sphi 0, %s355
      %s372 = sphi 0, %s356
    $region4: #{tpu_custom_call.1} parent=1 // loop_header_branch
      %26 = sbr.rel (%p24) target = $region8
    $region5: #{tpu_custom_call.1} parent=1 // loop_body
      %s28 = ssub.s32 %s23, 1
      %s29 = ssub.s32 %s23, 2
      %s39 = sadd.s32 1, %s32
      %p40 = scmp.ge.s32.totalorder %s39, 2
      %s41 = scalar_select %p40, 0, %s39
      %s42 = sadd.s32 1, %s31
      %s43 = scalar_select %p40, %s42, %s31
      %p44 = scmp.ge.s32.totalorder %s43, 3
      %s45 = scalar_select %p44, 0, %s43
      %s46 = sadd.s32 1, %s30
      %s47 = scalar_select %p44, %s46, %s30
      %p48 = scmp.ge.s32.totalorder %s47, 2
      %s49 = scalar_select %p48, 0, %s47
      %s50 = ssub.s32 %s30, %s49
      %s51 = ssub.s32 %s32, %s41
      %s52 = sor.u32 %s50, %s51
      %p53 = scmp.eq.s32.totalorder %s52, 0
      %s55 = sadd.s32 %s54, 1
      %s56 = scalar_select %p53, %s54, %s55
      %p59 = pneg %p53
      %p60 = scmp.eq.s32.totalorder %s23, 11
      %p61 = por %p59, %p60
      %p62 = scmp.ne.s32.totalorder %s54, %s57
      %p63 = scmp.eq.s32.totalorder %s23, 0
      %p64 = por %p62, %p63
      %p65 = scmp.ne.s32.totalorder %s54, %s57
      %p66 = scmp.eq.s32.totalorder %s28, 11
      %p67 = por %p65, %p66
      %p68 = scmp.ne.s32.totalorder %s57, %s58
      %p69 = scmp.eq.s32.totalorder %s28, 0
      %p70 = por %p68, %p69
      %p71 = scmp.ne.s32.totalorder %s57, %s58
      %p72 = scmp.eq.s32.totalorder %s29, 11
      %p73 = por %p71, %p72
      %p75 = scmp.ne.s32.totalorder %s58, %s74
      %p76 = scmp.eq.s32.totalorder %s29, 0
      %p77 = por %p75, %p76
      %s78 = ssub.s32 %s30, %s49
      %s79 = ssub.s32 %s32, %s41
      %s80 = sor.u32 %s78, %s79
      %p81 = scmp.eq.s32.totalorder %s80, 0
      %s83 = sadd.s32 %s82, 1
      %s84 = scalar_select %p81, %s82, %s83
      %p87 = pneg %p81
      %p88 = scmp.eq.s32.totalorder %s23, 11
      %p89 = por %p87, %p88
      %p90 = scmp.ne.s32.totalorder %s82, %s85
      %p91 = scmp.eq.s32.totalorder %s23, 0
      %p92 = por %p90, %p91
      %p93 = scmp.ne.s32.totalorder %s82, %s85
      %p94 = scmp.eq.s32.totalorder %s28, 11
      %p95 = por %p93, %p94
      %p96 = scmp.ne.s32.totalorder %s85, %s86
      %p97 = scmp.eq.s32.totalorder %s28, 0
      %p98 = por %p96, %p97
      %p99 = scmp.ne.s32.totalorder %s85, %s86
      %p100 = scmp.eq.s32.totalorder %s29, 11
      %p101 = por %p99, %p100
      %p103 = scmp.ne.s32.totalorder %s86, %s102
      %p104 = scmp.eq.s32.totalorder %s29, 0
      %p105 = por %p103, %p104
      %s106 = ssub.s32 %s30, %s49
      %s107 = ssub.s32 %s32, %s41
      %s108 = sor.u32 %s106, %s107
      %p109 = scmp.eq.s32.totalorder %s108, 0
      %s111 = sadd.s32 %s110, 1
      %s112 = scalar_select %p109, %s110, %s111
      %p115 = pneg %p109
      %p116 = scmp.eq.s32.totalorder %s23, 11
      %p117 = por %p115, %p116
      %p118 = scmp.ne.s32.totalorder %s110, %s113
      %p119 = scmp.eq.s32.totalorder %s23, 0
      %p120 = por %p118, %p119
      %p121 = scmp.ne.s32.totalorder %s110, %s113
      %p122 = scmp.eq.s32.totalorder %s28, 11
      %p123 = por %p121, %p122
      %p124 = scmp.ne.s32.totalorder %s113, %s114
      %p125 = scmp.eq.s32.totalorder %s28, 0
      %p126 = por %p124, %p125
      %p127 = scmp.ne.s32.totalorder %s113, %s114
      %p128 = scmp.eq.s32.totalorder %s29, 11
      %p129 = por %p127, %p128
      %p131 = scmp.ne.s32.totalorder %s114, %s130
      %p132 = scmp.eq.s32.totalorder %s29, 0
      %p133 = por %p131, %p132
      %s135 = sadd.s32 %s134, 1
      %p138 = scmp.eq.s32.totalorder %s23, 11
      %p139 = scmp.ne.s32.totalorder %s134, %s136
      %p140 = scmp.eq.s32.totalorder %s23, 0
      %p141 = por %p139, %p140
      %p142 = scmp.ne.s32.totalorder %s134, %s136
      %p143 = scmp.eq.s32.totalorder %s28, 11
      %p144 = por %p142, %p143
      %p145 = scmp.ne.s32.totalorder %s136, %s137
      %p146 = scmp.eq.s32.totalorder %s28, 0
      %p147 = por %p145, %p146
      %p148 = scmp.ne.s32.totalorder %s136, %s137
      %p149 = scmp.eq.s32.totalorder %s29, 11
      %p150 = por %p148, %p149
      %p152 = scmp.ne.s32.totalorder %s137, %s151
      %p153 = scmp.eq.s32.totalorder %s29, 0
      %p154 = por %p152, %p153
      %s156 = sadd.s32 %s155, 1
      %p159 = scmp.eq.s32.totalorder %s23, 11
      %p160 = scmp.ne.s32.totalorder %s155, %s157
      %p161 = scmp.eq.s32.totalorder %s23, 0
      %p162 = por %p160, %p161
      %p163 = scmp.ne.s32.totalorder %s155, %s157
      %p164 = scmp.eq.s32.totalorder %s28, 11
      %p165 = por %p163, %p164
      %p166 = scmp.ne.s32.totalorder %s157, %s158
      %p167 = scmp.eq.s32.totalorder %s28, 0
      %p168 = por %p166, %p167
      %p169 = scmp.ne.s32.totalorder %s157, %s158
      %p170 = scmp.eq.s32.totalorder %s29, 11
      %p171 = por %p169, %p170
      %p173 = scmp.ne.s32.totalorder %s158, %s172
      %p174 = scmp.eq.s32.totalorder %s29, 0
      %p175 = por %p173, %p174
      %s177 = sadd.s32 %s176, 1
      %p180 = scmp.eq.s32.totalorder %s23, 11
      %p181 = scmp.ne.s32.totalorder %s176, %s178
      %p182 = scmp.eq.s32.totalorder %s23, 0
      %p183 = por %p181, %p182
      %p184 = scmp.ne.s32.totalorder %s176, %s178
      %p185 = scmp.eq.s32.totalorder %s28, 11
      %p186 = por %p184, %p185
      %p187 = scmp.ne.s32.totalorder %s178, %s179
      %p188 = scmp.eq.s32.totalorder %s28, 0
      %p189 = por %p187, %p188
      %p190 = scmp.ne.s32.totalorder %s178, %s179
      %p191 = scmp.eq.s32.totalorder %s29, 11
      %p192 = por %p190, %p191
      %p194 = scmp.ne.s32.totalorder %s179, %s193
      %p195 = scmp.eq.s32.totalorder %s29, 0
      %p196 = por %p194, %p195
      %s198 = sadd.s32 %s197, 1
      %p201 = scmp.eq.s32.totalorder %s23, 11
      %p202 = scmp.ne.s32.totalorder %s197, %s199
      %p203 = scmp.eq.s32.totalorder %s23, 0
      %p204 = por %p202, %p203
      %p205 = scmp.ne.s32.totalorder %s197, %s199
      %p206 = scmp.eq.s32.totalorder %s28, 11
      %p207 = por %p205, %p206
      %p208 = scmp.ne.s32.totalorder %s199, %s200
      %p209 = scmp.eq.s32.totalorder %s28, 0
      %p210 = por %p208, %p209
      %p211 = scmp.ne.s32.totalorder %s199, %s200
      %p212 = scmp.eq.s32.totalorder %s29, 11
      %p213 = por %p211, %p212
      %p215 = scmp.ne.s32.totalorder %s200, %s214
      %p216 = scmp.eq.s32.totalorder %s29, 0
      %p217 = por %p215, %p216
      %s219 = sadd.s32 %s218, 1
      %p222 = scmp.eq.s32.totalorder %s23, 11
      %p223 = scmp.ne.s32.totalorder %s218, %s220
      %p224 = scmp.eq.s32.totalorder %s23, 0
      %p225 = por %p223, %p224
      %p226 = scmp.ne.s32.totalorder %s218, %s220
      %p227 = scmp.eq.s32.totalorder %s28, 11
      %p228 = por %p226, %p227
      %p229 = scmp.ne.s32.totalorder %s220, %s221
      %p230 = scmp.eq.s32.totalorder %s28, 0
      %p231 = por %p229, %p230
      %p232 = scmp.ne.s32.totalorder %s220, %s221
      %p233 = scmp.eq.s32.totalorder %s29, 11
      %p234 = por %p232, %p233
      %p236 = scmp.ne.s32.totalorder %s221, %s235
      %p237 = scmp.eq.s32.totalorder %s29, 0
      %p238 = por %p236, %p237
      %s240 = sadd.s32 %s239, 1
      %p243 = scmp.eq.s32.totalorder %s23, 11
      %p244 = scmp.ne.s32.totalorder %s239, %s241
      %p245 = scmp.eq.s32.totalorder %s23, 0
      %p246 = por %p244, %p245
      %p247 = scmp.ne.s32.totalorder %s239, %s241
      %p248 = scmp.eq.s32.totalorder %s28, 11
      %p249 = por %p247, %p248
      %p250 = scmp.ne.s32.totalorder %s241, %s242
      %p251 = scmp.eq.s32.totalorder %s28, 0
      %p252 = por %p250, %p251
      %p253 = scmp.ne.s32.totalorder %s241, %s242
      %p254 = scmp.eq.s32.totalorder %s29, 11
      %p255 = por %p253, %p254
      %p257 = scmp.ne.s32.totalorder %s242, %s256
      %p258 = scmp.eq.s32.totalorder %s29, 0
      %p259 = por %p257, %p258
      %s261 = sadd.s32 %s260, 1
      %p264 = scmp.eq.s32.totalorder %s23, 11
      %p265 = scmp.ne.s32.totalorder %s260, %s262
      %p266 = scmp.eq.s32.totalorder %s23, 0
      %p267 = por %p265, %p266
      %p268 = scmp.ne.s32.totalorder %s260, %s262
      %p269 = scmp.eq.s32.totalorder %s28, 11
      %p270 = por %p268, %p269
      %p271 = scmp.ne.s32.totalorder %s262, %s263
      %p272 = scmp.eq.s32.totalorder %s28, 0
      %p273 = por %p271, %p272
      %p274 = scmp.ne.s32.totalorder %s262, %s263
      %p275 = scmp.eq.s32.totalorder %s29, 11
      %p276 = por %p274, %p275
      %p278 = scmp.ne.s32.totalorder %s263, %s277
      %p279 = scmp.eq.s32.totalorder %s29, 0
      %p280 = por %p278, %p279
      %s282 = sadd.s32 %s281, 1
      %p285 = scmp.eq.s32.totalorder %s23, 11
      %p286 = scmp.ne.s32.totalorder %s281, %s283
      %p287 = scmp.eq.s32.totalorder %s23, 0
      %p288 = por %p286, %p287
      %p289 = scmp.ne.s32.totalorder %s281, %s283
      %p290 = scmp.eq.s32.totalorder %s28, 11
      %p291 = por %p289, %p290
      %p292 = scmp.ne.s32.totalorder %s283, %s284
      %p293 = scmp.eq.s32.totalorder %s28, 0
      %p294 = por %p292, %p293
      %p295 = scmp.ne.s32.totalorder %s283, %s284
      %p296 = scmp.eq.s32.totalorder %s29, 11
      %p297 = por %p295, %p296
      %p299 = scmp.ne.s32.totalorder %s284, %s298
      %p300 = scmp.eq.s32.totalorder %s29, 0
      %p301 = por %p299, %p300
      %s303 = sadd.s32 %s302, 1
      %p306 = scmp.eq.s32.totalorder %s23, 11
      %p307 = scmp.ne.s32.totalorder %s302, %s304
      %p308 = scmp.eq.s32.totalorder %s23, 0
      %p309 = por %p307, %p308
      %p310 = scmp.ne.s32.totalorder %s302, %s304
      %p311 = scmp.eq.s32.totalorder %s28, 11
      %p312 = por %p310, %p311
      %p313 = scmp.ne.s32.totalorder %s304, %s305
      %p314 = scmp.eq.s32.totalorder %s28, 0
      %p315 = por %p313, %p314
      %p316 = scmp.ne.s32.totalorder %s304, %s305
      %p317 = scmp.eq.s32.totalorder %s29, 11
      %p318 = por %p316, %p317
      %p320 = scmp.ne.s32.totalorder %s305, %s319
      %p321 = scmp.eq.s32.totalorder %s29, 0
      %p322 = por %p320, %p321
      %s324 = sadd.s32 %s323, 1
      %p327 = scmp.eq.s32.totalorder %s23, 11
      %p328 = scmp.ne.s32.totalorder %s323, %s325
      %p329 = scmp.eq.s32.totalorder %s23, 0
      %p330 = por %p328, %p329
      %p331 = scmp.ne.s32.totalorder %s323, %s325
      %p332 = scmp.eq.s32.totalorder %s28, 11
      %p333 = por %p331, %p332
      %p334 = scmp.ne.s32.totalorder %s325, %s326
      %p335 = scmp.eq.s32.totalorder %s28, 0
      %p336 = por %p334, %p335
      %p337 = scmp.ne.s32.totalorder %s325, %s326
      %p338 = scmp.eq.s32.totalorder %s29, 11
      %p339 = por %p337, %p338
      %p341 = scmp.ne.s32.totalorder %s326, %s340
      %p342 = scmp.eq.s32.totalorder %s29, 0
      %p343 = por %p341, %p342
      %p344 = scmp.eq.s32.totalorder %s31, 2
      %s345 = scalar_select %p344, %s32, 0
      %p346 = scmp.eq.s32.totalorder %s45, 2
      %s347 = scalar_select %p346, %s41, 0
      %s348 = ssub.s32 %s30, %s49
      %s349 = ssub.s32 %s345, %s347
      %s350 = sor.u32 %s348, %s349
      %p351 = scmp.eq.s32.totalorder %s350, 0
      %s353 = sadd.s32 %s352, 1
      %s354 = scalar_select %p351, %s352, %s353
      %p357 = pneg %p351
      %p358 = scmp.eq.s32.totalorder %s23, 11
      %p359 = por %p357, %p358
      %p360 = scmp.ne.s32.totalorder %s352, %s355
      %p361 = scmp.eq.s32.totalorder %s23, 0
      %p362 = por %p360, %p361
      %p363 = scmp.ne.s32.totalorder %s352, %s355
      %p364 = scmp.eq.s32.totalorder %s28, 11
      %p365 = por %p363, %p364
      %p366 = scmp.ne.s32.totalorder %s355, %s356
      %p367 = scmp.eq.s32.totalorder %s28, 0
      %p368 = por %p366, %p367
      %p369 = scmp.ne.s32.totalorder %s355, %s356
      %p370 = scmp.eq.s32.totalorder %s29, 11
      %p371 = por %p369, %p370
      %p373 = scmp.ne.s32.totalorder %s356, %s372
      %p374 = scmp.eq.s32.totalorder %s29, 0
      %p375 = por %p373, %p374
      %p376 = scmp.le.s32.totalorder 1, %s23
      %p377 = scmp.lt.s32.totalorder %s23, 13
      %p378 = pnand %p376, %p377
      %p379 = pneg %p378
      // Predicated region
      $region9: #{tpu_custom_call.1} parent=5 // pred_check
        _
      $region10: #{tpu_custom_call.1} parent=5 // pred_check_branch
        %381 = sbr.rel (%p378) target = $region12
      $region11: #{tpu_custom_call.1} parent=5 // pred_region
        %s382 = ssub.s32 %s23, 1
        // Predicated region
        $region13: #{tpu_custom_call.1} parent=11 // pred_check
          %p383 = pneg %p147
        $region14: #{tpu_custom_call.1} parent=11 // pred_check_branch
          %385 = sbr.rel (%p383) target = $region16
        $region15: #{tpu_custom_call.1} parent=11 // pred_region
          _
        $region16: #{tpu_custom_call.1} parent=11 // pred_fallthru
          _
        // Predicated region
        $region17: #{tpu_custom_call.1} parent=11 // pred_check
          %p386 = pneg %p168
        $region18: #{tpu_custom_call.1} parent=11 // pred_check_branch
          %388 = sbr.rel (%p386) target = $region20
        $region19: #{tpu_custom_call.1} parent=11 // pred_region
          _
        $region20: #{tpu_custom_call.1} parent=11 // pred_fallthru
          _
        // Predicated region
        $region21: #{tpu_custom_call.1} parent=11 // pred_check
          %p389 = pneg %p189
        $region22: #{tpu_custom_call.1} parent=11 // pred_check_branch
          %391 = sbr.rel (%p389) target = $region24
        $region23: #{tpu_custom_call.1} parent=11 // pred_region
          _
        $region24: #{tpu_custom_call.1} parent=11 // pred_fallthru
          _
        // Predicated region
        $region25: #{tpu_custom_call.1} parent=11 // pred_check
          %p392 = pneg %p210
        $region26: #{tpu_custom_call.1} parent=11 // pred_check_branch
          %394 = sbr.rel (%p392) target = $region28
        $region27: #{tpu_custom_call.1} parent=11 // pred_region
          _
        $region28: #{tpu_custom_call.1} parent=11 // pred_fallthru
          _
        // Predicated region
        $region29: #{tpu_custom_call.1} parent=11 // pred_check
          %p395 = pneg %p231
        $region30: #{tpu_custom_call.1} parent=11 // pred_check_branch
          %397 = sbr.rel (%p395) target = $region32
        $region31: #{tpu_custom_call.1} parent=11 // pred_region
          _
        $region32: #{tpu_custom_call.1} parent=11 // pred_fallthru
          _
        // Predicated region
        $region33: #{tpu_custom_call.1} parent=11 // pred_check
          %p398 = pneg %p252
        $region34: #{tpu_custom_call.1} parent=11 // pred_check_branch
          %400 = sbr.rel (%p398) target = $region36
        $region35: #{tpu_custom_call.1} parent=11 // pred_region
          _
        $region36: #{tpu_custom_call.1} parent=11 // pred_fallthru
          _
        // Predicated region
        $region37: #{tpu_custom_call.1} parent=11 // pred_check
          %p401 = pneg %p273
        $region38: #{tpu_custom_call.1} parent=11 // pred_check_branch
          %403 = sbr.rel (%p401) target = $region40
        $region39: #{tpu_custom_call.1} parent=11 // pred_region
          _
        $region40: #{tpu_custom_call.1} parent=11 // pred_fallthru
          _
        // Predicated region
        $region41: #{tpu_custom_call.1} parent=11 // pred_check
          %p404 = pneg %p294
        $region42: #{tpu_custom_call.1} parent=11 // pred_check_branch
          %406 = sbr.rel (%p404) target = $region44
        $region43: #{tpu_custom_call.1} parent=11 // pred_region
          _
        $region44: #{tpu_custom_call.1} parent=11 // pred_fallthru
          _
        // Predicated region
        $region45: #{tpu_custom_call.1} parent=11 // pred_check
          %p407 = pneg %p315
        $region46: #{tpu_custom_call.1} parent=11 // pred_check_branch
          %409 = sbr.rel (%p407) target = $region48
        $region47: #{tpu_custom_call.1} parent=11 // pred_region
          _
        $region48: #{tpu_custom_call.1} parent=11 // pred_fallthru
          _
        // Predicated region
        $region49: #{tpu_custom_call.1} parent=11 // pred_check
          %p410 = pneg %p336
        $region50: #{tpu_custom_call.1} parent=11 // pred_check_branch
          %412 = sbr.rel (%p410) target = $region52
        $region51: #{tpu_custom_call.1} parent=11 // pred_region
          _
        $region52: #{tpu_custom_call.1} parent=11 // pred_fallthru
          _
      $region12: #{tpu_custom_call.1} parent=5 // pred_fallthru
        _
      %p413 = scmp.lt.s32.totalorder %s23, 12
      // Predicated region
      $region53: #{tpu_custom_call.1} parent=5 // pred_check
        %p414 = pneg %p413
      $region54: #{tpu_custom_call.1} parent=5 // pred_check_branch
        %416 = sbr.rel (%p414) target = $region56
      $region55: #{tpu_custom_call.1} parent=5 // pred_region
        // Predicated region
        $region57: #{tpu_custom_call.1} parent=55 // pred_check
          %p417 = pneg %p64
        $region58: #{tpu_custom_call.1} parent=55 // pred_check_branch
          %419 = sbr.rel (%p417) target = $region60
        $region59: #{tpu_custom_call.1} parent=55 // pred_region
          %p420 = scmp.lt.s32.totalorder %s30, 1
          %s421 = scalar_select %p420, %s30, 1
          %p422 = scmp.lt.s32.totalorder %s32, 1
          %s423 = scalar_select %p422, %s32, 1
          %s424 = smul.addr %s421, 2
          %s425 = sadd.s32 %s423, %s424
          %s426 = smul.addr %s425, 4
          %s427 = scalar_lea.vmem %s0, %s426
        $region60: #{tpu_custom_call.1} parent=55 // pred_fallthru
          _
        // Predicated region
        $region61: #{tpu_custom_call.1} parent=55 // pred_check
          %p428 = pneg %p92
        $region62: #{tpu_custom_call.1} parent=55 // pred_check_branch
          %430 = sbr.rel (%p428) target = $region64
        $region63: #{tpu_custom_call.1} parent=55 // pred_region
          %p431 = scmp.lt.s32.totalorder %s30, 1
          %s432 = scalar_select %p431, %s30, 1
          %p433 = scmp.lt.s32.totalorder %s32, 1
          %s434 = scalar_select %p433, %s32, 1
          %s435 = smul.addr %s432, 2
          %s436 = sadd.s32 %s434, %s435
          %s437 = smul.addr %s436, 4
          %s438 = scalar_lea.vmem %s1, %s437
        $region64: #{tpu_custom_call.1} parent=55 // pred_fallthru
          _
        // Predicated region
        $region65: #{tpu_custom_call.1} parent=55 // pred_check
          %p439 = pneg %p120
        $region66: #{tpu_custom_call.1} parent=55 // pred_check_branch
          %441 = sbr.rel (%p439) target = $region68
        $region67: #{tpu_custom_call.1} parent=55 // pred_region
          %p442 = scmp.lt.s32.totalorder %s30, 1
          %s443 = scalar_select %p442, %s30, 1
          %p444 = scmp.lt.s32.totalorder %s32, 1
          %s445 = scalar_select %p444, %s32, 1
          %s446 = smul.addr %s443, 2
          %s447 = sadd.s32 %s445, %s446
          %s448 = smul.addr %s447, 8
          %s449 = scalar_lea.vmem %s2, %s448
        $region68: #{tpu_custom_call.1} parent=55 // pred_fallthru
          _
      $region56: #{tpu_custom_call.1} parent=5 // pred_fallthru
        _
      %p450 = scmp.le.s32.totalorder 1, %s23
      %p451 = scmp.lt.s32.totalorder %s23, 13
      %p452 = pnand %p450, %p451
      %p453 = pneg %p452
      // Predicated region
      $region69: #{tpu_custom_call.1} parent=5 // pred_check
        _
      $region70: #{tpu_custom_call.1} parent=5 // pred_check_branch
        %455 = sbr.rel (%p452) target = $region72
      $region71: #{tpu_custom_call.1} parent=5 // pred_region
        %s456 = ssub.s32 %s23, 1
        %p457 = scmp.lt.s32.totalorder %s33, 1
        %s458 = scalar_select %p457, %s33, 1
        %p459 = scmp.lt.s32.totalorder %s35, 1
        %s460 = scalar_select %p459, %s35, 1
        %s461 = smul.addr %s458, 2
        %s462 = sadd.s32 %s460, %s461
        %s463 = smul.addr %s462, 4
        %s464 = scalar_lea.vmem %s0, %s463
        %p465 = pneg %p70
        %p466 = pneg %p67
        %p467 = scmp.lt.s32.totalorder %s33, 1
        %s468 = scalar_select %p467, %s33, 1
        %p469 = scmp.lt.s32.totalorder %s35, 1
        %s470 = scalar_select %p469, %s35, 1
        %s471 = smul.addr %s468, 2
        %s472 = sadd.s32 %s470, %s471
        %s473 = smul.addr %s472, 4
        %s474 = scalar_lea.vmem %s1, %s473
        %p475 = pneg %p98
        %p476 = pneg %p95
        %p477 = scmp.lt.s32.totalorder %s33, 1
        %s478 = scalar_select %p477, %s33, 1
        %p479 = scmp.lt.s32.totalorder %s35, 1
        %s480 = scalar_select %p479, %s35, 1
        %s481 = smul.addr %s478, 2
        %s482 = sadd.s32 %s480, %s481
        %s483 = smul.addr %s482, 8
        %s484 = scalar_lea.vmem %s2, %s483
        %p485 = pneg %p126
        %p486 = pneg %p123
        %p487 = pneg %p147
        %p488 = pneg %p144
        %p489 = pneg %p168
        %p490 = pneg %p165
        %p491 = pneg %p189
        %p492 = pneg %p186
        %p493 = pneg %p210
        %p494 = pneg %p207
        %p495 = pneg %p231
        %p496 = pneg %p228
        %p497 = pneg %p252
        %p498 = pneg %p249
        %p499 = pneg %p273
        %p500 = pneg %p270
        %p501 = pneg %p294
        %p502 = pneg %p291
        %p503 = pneg %p315
        %p504 = pneg %p312
        %p505 = pneg %p336
        %p506 = pneg %p333
        %p507 = pneg %p368
        %p508 = pneg %p365
        %s509 = sand.u32 %s355, 1
        %s510 = scalar_lea.sflag [#allocation9], %s509
        %s511 = sand.u32 %s355, 1
        %s512 = smul.addr %s511, 32
        %s513 = scalar_lea.vmem [#allocation8], %s512
        %p514 = scmp.lt.s32.totalorder %s33, 1
        %s515 = scalar_select %p514, %s33, 1
        %p516 = scmp.lt.s32.totalorder %s35, 1
        %s517 = scalar_select %p516, %s35, 1
        %s518 = smul.addr %s515, 2
        %s519 = sadd.s32 %s517, %s518
        %s520 = smul.addr %s519, 4
        %s521 = scalar_lea.vmem %s0, %s520
        %p522 = scmp.lt.s32.totalorder %s33, 1
        %s523 = scalar_select %p522, %s33, 1
        %p524 = scmp.lt.s32.totalorder %s35, 1
        %s525 = scalar_select %p524, %s35, 1
        %s526 = smul.addr %s523, 2
        %s527 = sadd.s32 %s525, %s526
        %s528 = smul.addr %s527, 4
        %s529 = scalar_lea.vmem %s1, %s528
        %p530 = scmp.lt.s32.totalorder %s33, 1
        %s531 = scalar_select %p530, %s33, 1
        %p532 = scmp.lt.s32.totalorder %s35, 1
        %s533 = scalar_select %p532, %s35, 1
        %s534 = smul.addr %s531, 2
        %s535 = sadd.s32 %s533, %s534
        %s536 = smul.addr %s535, 8
        %s537 = scalar_lea.vmem %s2, %s536
        %p538 = scmp.eq.s32.totalorder %s34, 2
        %s539 = scalar_select %p538, %s35, 0
        %p540 = scmp.eq.s32.totalorder %s34, 0
        %p541 = scmp.eq.s32.totalorder %s35, 0
        %p542 = pnand %p540, %p541
        %p543 = pneg %p542
        // Predicated region
        $region73: #{tpu_custom_call.1} parent=71 // pred_check
          _
        $region74: #{tpu_custom_call.1} parent=71 // pred_check_branch
          %545 = sbr.rel (%p542) target = $region76
        $region75: #{tpu_custom_call.1} parent=71 // pred_region
          %vm546 = vcmask 15360
          %547 = vst.msk [vmem:[#allocation2] sm:$0xff] %vm546, 0.0
          %548 = vst.msk [vmem:[#allocation2 + $0x8] sm:$0xff] %vm546, 0.0
          %549 = vst.msk [vmem:[#allocation2 + $0x10] sm:$0xff] %vm546, 0.0
          %550 = vst.msk [vmem:[#allocation2 + $0x18] sm:$0xff] %vm546, 0.0
          %vm551 = vcmask 7168
          %552 = vst.msk [vmem:[#allocation4] sm:$0xff] %vm551, 0.0
          %553 = vst.msk [vmem:[#allocation5] sm:$0xff] %vm551, 0.0
          %554 = vst.msk [vmem:[#allocation5 + $0x8] sm:$0xff] %vm551, 0.0
          %555 = vst.msk [vmem:[#allocation5 + $0x10] sm:$0xff] %vm551, 0.0
          %556 = vst.msk [vmem:[#allocation5 + $0x18] sm:$0xff] %vm551, 0.0
          %vm557 = vcmask 64512
          %558 = vst.msk [vmem:[#allocation6] sm:$0xff] %vm557, 0.0
          %559 = vst.msk [vmem:[#allocation6 + $0x8] sm:$0xff] %vm557, 0.0
          %560 = vst.msk [vmem:[#allocation6 + $0x10] sm:$0xff] %vm557, 0.0
          %561 = vst.msk [vmem:[#allocation6 + $0x18] sm:$0xff] %vm557, 0.0
        $region76: #{tpu_custom_call.1} parent=71 // pred_fallthru
          _
        // Predicated region
        $region77: #{tpu_custom_call.1} parent=71 // pred_check
          %p562 = pneg %p540
        $region78: #{tpu_custom_call.1} parent=71 // pred_check_branch
          %564 = sbr.rel (%p562) target = $region80
        $region79: #{tpu_custom_call.1} parent=71 // pred_region
          %v565 = vld [vmem:[%s3] sm:$0xff]
          %v566 = vld [vmem:[%s3 + $0x8] sm:$0xff]
          %v567 = vld [vmem:[%s3 + $0x10] sm:$0xff]
          %v568 = vld [vmem:[%s3 + $0x18] sm:$0xff]
          %v569 = vld [vmem:[%s521] sm:$0xf]
          %v570 = vld [vmem:[%s4] sm:$0xff]
          %v571 = vld [vmem:[%s4 + $0x8] sm:$0xff]
          %v572 = vld [vmem:[%s4 + $0x10] sm:$0xff]
          %v573 = vld [vmem:[%s4 + $0x18] sm:$0xff]
          %v574 = vld [vmem:[%s529] sm:$0xf]
          %vm575 = vcmask 31744
          %v577 = vsel %vm575, %v570, 0
          %v580 = vsel %vm575, %v571, 0
          %v583 = vsel %vm575, %v572, 0
          %v586 = vsel %vm575, %v573, 0
          %vm588 = vcmask 1043456
          %v590 = vsel %vm588, %v574, 0
          %592 = vmatprep.subr.mxu0 0.0
          %593 = vmatpush1.msra.mxu0 0.0
          %594 = vmatprep.subr.mxu0 0.0
          %595 = vmatpush1.msra.mxu0 0.0
          %596 = vmatprep.subr.mxu0 0.0
          %597 = vmatpush1.msra.mxu0 0.0
          %598 = vmatprep.subr.mxu0 0.0
          %599 = vmatpush1.msra.mxu0 0.0
          %600 = vmatprep.subr.mxu0 0.0
          %601 = vmatpush1.msra.mxu0 0.0
          %602 = vmatprep.subr.mxu0 0.0
          %603 = vmatpush1.msra.mxu0 0.0
          %604 = vmatprep.subr.mxu0 0.0
          %605 = vmatpush1.msra.mxu0 0.0
          %606 = vmatprep.subr.mxu0 0.0
          %607 = vmatpush1.msra.mxu0 0.0
          %608 = vmatprep.subr.mxu0 0.0
          %609 = vmatpush1.msra.mxu0 0.0
          %610 = vmatprep.subr.mxu0 0.0
          %611 = vmatpush1.msra.mxu0 0.0
          %612 = vmatprep.subr.mxu0 0.0
          %613 = vmatpush1.msra.mxu0 0.0
          %614 = vmatprep.subr.mxu0 0.0
          %615 = vmatpush1.msra.mxu0 0.0
          %616 = vmatprep.subr.mxu0 0.0
          %617 = vmatpush1.msra.mxu0 0.0
          %618 = vmatprep.subr.mxu0 0.0
          %619 = vmatpush1.msra.mxu0 0.0
          %620 = vmatprep.subr.mxu0 0.0
          %621 = vmatpush1.msra.mxu0 0.0
          %622 = vmatprep.subr.mxu0 0.0
          %623 = vmatpush1.msra.mxu0 %v590
          %624 = vmatprep.subr.mxu0 0.0
          %625 = vmatpush2.msra.mxu0 0.0
          %626 = vmatprep.subr.mxu0 0.0
          %627 = vmatpush2.msra.mxu0 0.0
          %628 = vmatprep.subr.mxu0 0.0
          %629 = vmatpush2.msra.mxu0 0.0
          %630 = vmatprep.subr.mxu0 0.0
          %631 = vmatpush2.msra.mxu0 0.0
          %632 = vmatprep.subr.mxu0 0.0
          %633 = vmatpush2.msra.mxu0 0.0
          %634 = vmatprep.subr.mxu0 0.0
          %635 = vmatpush2.msra.mxu0 0.0
          %636 = vmatprep.subr.mxu0 0.0
          %637 = vmatpush2.msra.mxu0 0.0
          %638 = vmatprep.subr.mxu0 0.0
          %639 = vmatpush2.msra.mxu0 0.0
          %640 = vmatprep.subr.mxu0 0.0
          %641 = vmatpush2.msra.mxu0 0.0
          %642 = vmatprep.subr.mxu0 0.0
          %643 = vmatpush2.msra.mxu0 0.0
          %644 = vmatprep.subr.mxu0 0.0
          %645 = vmatpush2.msra.mxu0 0.0
          %646 = vmatprep.subr.mxu0 0.0
          %647 = vmatpush2.msra.mxu0 0.0
          %648 = vmatprep.subr.mxu0 0.0
          %649 = vmatpush2.msra.mxu0 0.0
          %650 = vmatprep.subr.mxu0 0.0
          %651 = vmatpush2.msra.mxu0 0.0
          %652 = vmatprep.subr.mxu0 0.0
          %653 = vmatpush2.msra.mxu0 0.0
          %654 = vmatprep.subr.mxu0 0.0
          %655 = vmatpush2.msra.mxu0 0.0
          %656 = vmatprep.mubr.f32.mxu0 0.0
          %657 = vmatmul.mubr.f32.gmra.mxu0 %v577
          %v658 = vpop.f32.mrf.mxu0
          %v659 = vadd.f32 0.0, %v658
          %v660 = vpop.f32.mrf.mxu0
          %661 = vmatprep.mubr.f32.mxu0 0.0
          %662 = vmatmul.mubr.f32.gmra.mxu0 %v580
          %v663 = vpop.f32.mrf.mxu0
          %v664 = vadd.f32 0.0, %v663
          %v665 = vpop.f32.mrf.mxu0
          %666 = vmatprep.mubr.f32.mxu0 0.0
          %667 = vmatmul.mubr.f32.gmra.mxu0 %v583
          %v668 = vpop.f32.mrf.mxu0
          %v669 = vadd.f32 0.0, %v668
          %v670 = vpop.f32.mrf.mxu0
          %671 = vmatprep.mubr.f32.mxu0 0.0
          %672 = vmatmul.mubr.f32.gmra.mxu0 %v586
          %v673 = vpop.f32.mrf.mxu0
          %v674 = vadd.f32 0.0, %v673
          %v675 = vpop.f32.mrf.mxu0
          %676 = vdwg.mxu0
          %v678 = vsel %vm575, %v565, 0
          %v681 = vsel %vm575, %v566, 0
          %v684 = vsel %vm575, %v567, 0
          %v687 = vsel %vm575, %v568, 0
          %v690 = vsel %vm588, %v569, 0
          %692 = vmatprep.subr.mxu0 0.0
          %693 = vmatpush1.msra.mxu0 0.0
          %694 = vmatprep.subr.mxu0 0.0
          %695 = vmatpush1.msra.mxu0 0.0
          %696 = vmatprep.subr.mxu0 0.0
          %697 = vmatpush1.msra.mxu0 0.0
          %698 = vmatprep.subr.mxu0 0.0
          %699 = vmatpush1.msra.mxu0 0.0
          %700 = vmatprep.subr.mxu0 0.0
          %701 = vmatpush1.msra.mxu0 0.0
          %702 = vmatprep.subr.mxu0 0.0
          %703 = vmatpush1.msra.mxu0 0.0
          %704 = vmatprep.subr.mxu0 0.0
          %705 = vmatpush1.msra.mxu0 0.0
          %706 = vmatprep.subr.mxu0 0.0
          %707 = vmatpush1.msra.mxu0 0.0
          %708 = vmatprep.subr.mxu0 0.0
          %709 = vmatpush1.msra.mxu0 0.0
          %710 = vmatprep.subr.mxu0 0.0
          %711 = vmatpush1.msra.mxu0 0.0
          %712 = vmatprep.subr.mxu0 0.0
          %713 = vmatpush1.msra.mxu0 0.0
          %714 = vmatprep.subr.mxu0 0.0
          %715 = vmatpush1.msra.mxu0 0.0
          %716 = vmatprep.subr.mxu0 0.0
          %717 = vmatpush1.msra.mxu0 0.0
          %718 = vmatprep.subr.mxu0 0.0
          %719 = vmatpush1.msra.mxu0 0.0
          %720 = vmatprep.subr.mxu0 0.0
          %721 = vmatpush1.msra.mxu0 0.0
          %722 = vmatprep.subr.mxu0 0.0
          %723 = vmatpush1.msra.mxu0 %v690
          %724 = vmatprep.subr.mxu0 0.0
          %725 = vmatpush2.msra.mxu0 0.0
          %726 = vmatprep.subr.mxu0 0.0
          %727 = vmatpush2.msra.mxu0 0.0
          %728 = vmatprep.subr.mxu0 0.0
          %729 = vmatpush2.msra.mxu0 0.0
          %730 = vmatprep.subr.mxu0 0.0
          %731 = vmatpush2.msra.mxu0 0.0
          %732 = vmatprep.subr.mxu0 0.0
          %733 = vmatpush2.msra.mxu0 0.0
          %734 = vmatprep.subr.mxu0 0.0
          %735 = vmatpush2.msra.mxu0 0.0
          %736 = vmatprep.subr.mxu0 0.0
          %737 = vmatpush2.msra.mxu0 0.0
          %738 = vmatprep.subr.mxu0 0.0
          %739 = vmatpush2.msra.mxu0 0.0
          %740 = vmatprep.subr.mxu0 0.0
          %741 = vmatpush2.msra.mxu0 0.0
          %742 = vmatprep.subr.mxu0 0.0
          %743 = vmatpush2.msra.mxu0 0.0
          %744 = vmatprep.subr.mxu0 0.0
          %745 = vmatpush2.msra.mxu0 0.0
          %746 = vmatprep.subr.mxu0 0.0
          %747 = vmatpush2.msra.mxu0 0.0
          %748 = vmatprep.subr.mxu0 0.0
          %749 = vmatpush2.msra.mxu0 0.0
          %750 = vmatprep.subr.mxu0 0.0
          %751 = vmatpush2.msra.mxu0 0.0
          %752 = vmatprep.subr.mxu0 0.0
          %753 = vmatpush2.msra.mxu0 0.0
          %754 = vmatprep.subr.mxu0 0.0
          %755 = vmatpush2.msra.mxu0 0.0
          %756 = vmatprep.mubr.f32.mxu0 0.0
          %757 = vmatmul.mubr.f32.gmra.mxu0 %v678
          %v758 = vpop.f32.mrf.mxu0
          %v759 = vadd.f32 %v659, %v758
          %v760 = vpop.f32.mrf.mxu0
          %761 = vmatprep.mubr.f32.mxu0 0.0
          %762 = vmatmul.mubr.f32.gmra.mxu0 %v681
          %v763 = vpop.f32.mrf.mxu0
          %v764 = vadd.f32 %v664, %v763
          %v765 = vpop.f32.mrf.mxu0
          %766 = vmatprep.mubr.f32.mxu0 0.0
          %767 = vmatmul.mubr.f32.gmra.mxu0 %v684
          %v768 = vpop.f32.mrf.mxu0
          %v769 = vadd.f32 %v669, %v768
          %v770 = vpop.f32.mrf.mxu0
          %771 = vmatprep.mubr.f32.mxu0 0.0
          %772 = vmatmul.mubr.f32.gmra.mxu0 %v687
          %v773 = vpop.f32.mrf.mxu0
          %v774 = vadd.f32 %v674, %v773
          %v775 = vpop.f32.mrf.mxu0
          %776 = vdwg.mxu0
          %v777 = vld [vmem:[%s5] sm:$0xff]
          %v778 = vld [vmem:[%s5 + $0x8] sm:$0xff]
          %v779 = vld [vmem:[%s5 + $0x10] sm:$0xff]
          %v780 = vld [vmem:[%s5 + $0x18] sm:$0xff]
          %v781 = vld [vmem:[%s537] sm:$0xff]
          %vm782 = vcmask 64512
          %v784 = vsel %vm782, %v777, 0
          %v787 = vsel %vm782, %v778, 0
          %v790 = vsel %vm782, %v779, 0
          %v793 = vsel %vm782, %v780, 0
          %795 = vmatprep.subr.mxu0 0.0
          %796 = vmatpush1.msra.mxu0 0.0
          %797 = vmatprep.subr.mxu0 0.0
          %798 = vmatpush1.msra.mxu0 0.0
          %799 = vmatprep.subr.mxu0 0.0
          %800 = vmatpush1.msra.mxu0 0.0
          %801 = vmatprep.subr.mxu0 0.0
          %802 = vmatpush1.msra.mxu0 0.0
          %803 = vmatprep.subr.mxu0 0.0
          %804 = vmatpush1.msra.mxu0 0.0
          %805 = vmatprep.subr.mxu0 0.0
          %806 = vmatpush1.msra.mxu0 0.0
          %807 = vmatprep.subr.mxu0 0.0
          %808 = vmatpush1.msra.mxu0 0.0
          %809 = vmatprep.subr.mxu0 0.0
          %810 = vmatpush1.msra.mxu0 0.0
          %811 = vmatprep.subr.mxu0 0.0
          %812 = vmatpush1.msra.mxu0 0.0
          %813 = vmatprep.subr.mxu0 0.0
          %814 = vmatpush1.msra.mxu0 0.0
          %815 = vmatprep.subr.mxu0 0.0
          %816 = vmatpush1.msra.mxu0 0.0
          %817 = vmatprep.subr.mxu0 0.0
          %818 = vmatpush1.msra.mxu0 0.0
          %819 = vmatprep.subr.mxu0 0.0
          %820 = vmatpush1.msra.mxu0 0.0
          %821 = vmatprep.subr.mxu0 0.0
          %822 = vmatpush1.msra.mxu0 0.0
          %823 = vmatprep.subr.mxu0 0.0
          %824 = vmatpush1.msra.mxu0 0.0
          %825 = vmatprep.subr.mxu0 0.0
          %826 = vmatpush1.msra.mxu0 %v781
          %827 = vmatprep.subr.mxu0 0.0
          %828 = vmatpush2.msra.mxu0 0.0
          %829 = vmatprep.subr.mxu0 0.0
          %830 = vmatpush2.msra.mxu0 0.0
          %831 = vmatprep.subr.mxu0 0.0
          %832 = vmatpush2.msra.mxu0 0.0
          %833 = vmatprep.subr.mxu0 0.0
          %834 = vmatpush2.msra.mxu0 0.0
          %835 = vmatprep.subr.mxu0 0.0
          %836 = vmatpush2.msra.mxu0 0.0
          %837 = vmatprep.subr.mxu0 0.0
          %838 = vmatpush2.msra.mxu0 0.0
          %839 = vmatprep.subr.mxu0 0.0
          %840 = vmatpush2.msra.mxu0 0.0
          %841 = vmatprep.subr.mxu0 0.0
          %842 = vmatpush2.msra.mxu0 0.0
          %843 = vmatprep.subr.mxu0 0.0
          %844 = vmatpush2.msra.mxu0 0.0
          %845 = vmatprep.subr.mxu0 0.0
          %846 = vmatpush2.msra.mxu0 0.0
          %847 = vmatprep.subr.mxu0 0.0
          %848 = vmatpush2.msra.mxu0 0.0
          %849 = vmatprep.subr.mxu0 0.0
          %850 = vmatpush2.msra.mxu0 0.0
          %851 = vmatprep.subr.mxu0 0.0
          %852 = vmatpush2.msra.mxu0 0.0
          %853 = vmatprep.subr.mxu0 0.0
          %854 = vmatpush2.msra.mxu0 0.0
          %855 = vmatprep.subr.mxu0 0.0
          %856 = vmatpush2.msra.mxu0 0.0
          %857 = vmatprep.subr.mxu0 0.0
          %858 = vmatpush2.msra.mxu0 0.0
          %859 = vmatprep.mubr.f32.mxu0 0.0
          %860 = vmatmul.mubr.f32.gmra.mxu0 %v784
          %v861 = vpop.f32.mrf.mxu0
          %v862 = vadd.f32 0.0, %v861
          %v863 = vpop.f32.mrf.mxu0
          %864 = vmatprep.mubr.f32.mxu0 0.0
          %865 = vmatmul.mubr.f32.gmra.mxu0 %v787
          %v866 = vpop.f32.mrf.mxu0
          %v867 = vadd.f32 0.0, %v866
          %v868 = vpop.f32.mrf.mxu0
          %869 = vmatprep.mubr.f32.mxu0 0.0
          %870 = vmatmul.mubr.f32.gmra.mxu0 %v790
          %v871 = vpop.f32.mrf.mxu0
          %v872 = vadd.f32 0.0, %v871
          %v873 = vpop.f32.mrf.mxu0
          %874 = vmatprep.mubr.f32.mxu0 0.0
          %875 = vmatmul.mubr.f32.gmra.mxu0 %v793
          %v876 = vpop.f32.mrf.mxu0
          %v877 = vadd.f32 0.0, %v876
          %v878 = vpop.f32.mrf.mxu0
          %879 = vdwg.mxu0
          %v880 = vadd.f32 %v759, %v862
          %v881 = vadd.f32 %v764, %v867
          %v882 = vadd.f32 %v769, %v872
          %v883 = vadd.f32 %v774, %v877
          %v884 = vld [vmem:[#allocation2] sm:$0xff]
          %v885 = vld [vmem:[#allocation2 + $0x8] sm:$0xff]
          %v886 = vld [vmem:[#allocation2 + $0x10] sm:$0xff]
          %v887 = vld [vmem:[#allocation2 + $0x18] sm:$0xff]
          %888 = vadd.xlane.f32.xlu0 %v880
          %v889 = vpop.xlane.xlu0 %888
          %890 = vadd.xlane.f32.xlu0 %v881
          %v891 = vpop.xlane.xlu0 %890
          %892 = vadd.xlane.f32.xlu0 %v882
          %v893 = vpop.xlane.xlu0 %892
          %894 = vadd.xlane.f32.xlu0 %v883
          %v895 = vpop.xlane.xlu0 %894
          %v896 = vmul.f32 %v880, %v880
          %v897 = vmul.f32 %v881, %v881
          %v898 = vmul.f32 %v882, %v882
          %v899 = vmul.f32 %v883, %v883
          %900 = vadd.xlane.f32.xlu0 %v896
          %v901 = vpop.xlane.xlu0 %900
          %902 = vadd.xlane.f32.xlu0 %v897
          %v903 = vpop.xlane.xlu0 %902
          %904 = vadd.xlane.f32.xlu0 %v898
          %v905 = vpop.xlane.xlu0 %904
          %906 = vadd.xlane.f32.xlu0 %v899
          %v907 = vpop.xlane.xlu0 %906
          %vm908 = vcmask 7168
          %v909 = vsel %vm908, %v889, %v901
          %v910 = vsel %vm908, %v891, %v903
          %v911 = vsel %vm908, %v893, %v905
          %v912 = vsel %vm908, %v895, %v907
          %v913 = vadd.f32 %v884, %v909
          %v914 = vadd.f32 %v885, %v910
          %v915 = vadd.f32 %v886, %v911
          %v916 = vadd.f32 %v887, %v912
          %vm917 = vcmask 15360
          %918 = vst.msk [vmem:[#allocation2] sm:$0xff] %vm917, %v913
          %919 = vst.msk [vmem:[#allocation2 + $0x8] sm:$0xff] %vm917, %v914
          %920 = vst.msk [vmem:[#allocation2 + $0x10] sm:$0xff] %vm917, %v915
          %921 = vst.msk [vmem:[#allocation2 + $0x18] sm:$0xff] %vm917, %v916
        $region80: #{tpu_custom_call.1} parent=71 // pred_fallthru
          _
        %p922 = scmp.eq.s32.totalorder %s34, 1
        %p923 = pnand %p922, %p541
        %p924 = pneg %p923
        // Predicated region
        $region81: #{tpu_custom_call.1} parent=71 // pred_check
          _
        $region82: #{tpu_custom_call.1} parent=71 // pred_check_branch
          %926 = sbr.rel (%p923) target = $region84
        $region83: #{tpu_custom_call.1} parent=71 // pred_region
          %v927 = vld [vmem:[%s6] sm:$0xff]
          %v928 = vld [vmem:[%s6 + $0x8] sm:$0xff]
          %v929 = vld [vmem:[%s6 + $0x10] sm:$0xff]
          %v930 = vld [vmem:[%s6 + $0x18] sm:$0xff]
          %v931 = vld [vmem:[#allocation2] sm:$0xff]
          %v932 = vld [vmem:[#allocation2 + $0x8] sm:$0xff]
          %v933 = vld [vmem:[#allocation2 + $0x10] sm:$0xff]
          %v934 = vld [vmem:[#allocation2 + $0x18] sm:$0xff]
          %935 = vxpose.xlu0.b32.start [1/16] %v927, 128
          %936 = vxpose.xlu0.b32.cont [2/16] %v928, 128
          %937 = vxpose.xlu0.b32.cont [3/16] %v929, 128
          %938 = vxpose.xlu0.b32.cont [4/16] %v930, 128
          %939 = vxpose.xlu0.b32.cont [5/16] 0.0, 128
          %940 = vxpose.xlu0.b32.cont [6/16] 0.0, 128
          %941 = vxpose.xlu0.b32.cont [7/16] 0.0, 128
          %942 = vxpose.xlu0.b32.cont [8/16] 0.0, 128
          %943 = vxpose.xlu0.b32.cont [9/16] 0.0, 128
          %944 = vxpose.xlu0.b32.cont [10/16] 0.0, 128
          %945 = vxpose.xlu0.b32.cont [11/16] 0.0, 128
          %946 = vxpose.xlu0.b32.cont [12/16] 0.0, 128
          %947 = vxpose.xlu0.b32.cont [13/16] 0.0, 128
          %948 = vxpose.xlu0.b32.cont [14/16] 0.0, 128
          %949 = vxpose.xlu0.b32.cont [15/16] 0.0, 128
          %950 = vxpose.xlu0.b32.end [16/16] 0.0, 128
          %v951 = vpop.trf.xlu0
          %v952 = vpop.trf.xlu0
          %v953 = vpop.trf.xlu0
          %v954 = vpop.trf.xlu0
          %v955 = vpop.trf.xlu0
          %v956 = vpop.trf.xlu0
          %v957 = vpop.trf.xlu0
          %v958 = vpop.trf.xlu0
          %v959 = vpop.trf.xlu0
          %v960 = vpop.trf.xlu0
          %v961 = vpop.trf.xlu0
          %v962 = vpop.trf.xlu0
          %v963 = vpop.trf.xlu0
          %v964 = vpop.trf.xlu0
          %v965 = vpop.trf.xlu0
          %v966 = vpop.trf.xlu0
          %vm967 = vcmask 261120
          %v969 = vsel %vm967, %v951, 0
          %v972 = vsel %vm967, %v952, 0
          %974 = vmatprep.subr.mxu0 0.0
          %975 = vmatpush1.msra.mxu0 0.0
          %976 = vmatprep.subr.mxu0 0.0
          %977 = vmatpush1.msra.mxu0 0.0
          %978 = vmatprep.subr.mxu0 0.0
          %979 = vmatpush1.msra.mxu0 0.0
          %980 = vmatprep.subr.mxu0 0.0
          %981 = vmatpush1.msra.mxu0 0.0
          %982 = vmatprep.subr.mxu0 0.0
          %983 = vmatpush1.msra.mxu0 0.0
          %984 = vmatprep.subr.mxu0 0.0
          %985 = vmatpush1.msra.mxu0 0.0
          %986 = vmatprep.subr.mxu0 0.0
          %987 = vmatpush1.msra.mxu0 0.0
          %988 = vmatprep.subr.mxu0 0.0
          %989 = vmatpush1.msra.mxu0 0.0
          %990 = vmatprep.subr.mxu0 0.0
          %991 = vmatpush1.msra.mxu0 0.0
          %992 = vmatprep.subr.mxu0 0.0
          %993 = vmatpush1.msra.mxu0 0.0
          %994 = vmatprep.subr.mxu0 0.0
          %995 = vmatpush1.msra.mxu0 0.0
          %996 = vmatprep.subr.mxu0 0.0
          %997 = vmatpush1.msra.mxu0 0.0
          %998 = vmatprep.subr.mxu0 0.0
          %999 = vmatpush1.msra.mxu0 %v934
          %1000 = vmatprep.subr.mxu0 0.0
          %1001 = vmatpush1.msra.mxu0 %v933
          %1002 = vmatprep.subr.mxu0 0.0
          %1003 = vmatpush1.msra.mxu0 %v932
          %1004 = vmatprep.subr.mxu0 0.0
          %1005 = vmatpush1.msra.mxu0 %v931
          %1006 = vmatprep.subr.mxu0 0.0
          %1007 = vmatpush2.msra.mxu0 0.0
          %1008 = vmatprep.subr.mxu0 0.0
          %1009 = vmatpush2.msra.mxu0 0.0
          %1010 = vmatprep.subr.mxu0 0.0
          %1011 = vmatpush2.msra.mxu0 0.0
          %1012 = vmatprep.subr.mxu0 0.0
          %1013 = vmatpush2.msra.mxu0 0.0
          %1014 = vmatprep.subr.mxu0 0.0
          %1015 = vmatpush2.msra.mxu0 0.0
          %1016 = vmatprep.subr.mxu0 0.0
          %1017 = vmatpush2.msra.mxu0 0.0
          %1018 = vmatprep.subr.mxu0 0.0
          %1019 = vmatpush2.msra.mxu0 0.0
          %1020 = vmatprep.subr.mxu0 0.0
          %1021 = vmatpush2.msra.mxu0 0.0
          %1022 = vmatprep.subr.mxu0 0.0
          %1023 = vmatpush2.msra.mxu0 0.0
          %1024 = vmatprep.subr.mxu0 0.0
          %1025 = vmatpush2.msra.mxu0 0.0
          %1026 = vmatprep.subr.mxu0 0.0
          %1027 = vmatpush2.msra.mxu0 0.0
          %1028 = vmatprep.subr.mxu0 0.0
          %1029 = vmatpush2.msra.mxu0 0.0
          %1030 = vmatprep.subr.mxu0 0.0
          %1031 = vmatpush2.msra.mxu0 0.0
          %1032 = vmatprep.subr.mxu0 0.0
          %1033 = vmatpush2.msra.mxu0 0.0
          %1034 = vmatprep.subr.mxu0 0.0
          %1035 = vmatpush2.msra.mxu0 0.0
          %1036 = vmatprep.subr.mxu0 0.0
          %1037 = vmatpush2.msra.mxu0 0.0
          %1038 = vmatprep.mubr.f32.mxu0 0.0
          %1039 = vmatmul.mubr.f32.gmra.mxu0 %v969
          %v1040 = vpop.f32.mrf.mxu0
          %v1041 = vadd.f32 0.0, %v1040
          %v1042 = vpop.f32.mrf.mxu0
          %1043 = vmatprep.mubr.f32.mxu0 0.0
          %1044 = vmatmul.mubr.f32.gmra.mxu0 %v972
          %v1045 = vpop.f32.mrf.mxu0
          %v1046 = vadd.f32 0.0, %v1045
          %v1047 = vpop.f32.mrf.mxu0
          %1048 = vdwg.mxu0
          %v1049 = vmul.f32 %v1041, 0.001953125
          %v1050 = vmul.f32 %v1046, 0.001953125
          %v1051 = vmul.f32 %v1049, %v1049
          %v1052 = vmul.f32 %v1050, %v1050
          %1055 = vrot.lane.b32.xlu0 %v1051, 1
          %v1056 = vpop.permute.xlu0 %1055
          %1057 = vrot.lane.b32.xlu0 %v1052, 1
          %v1058 = vpop.permute.xlu0 %1057
          %v1061 = vsub.f32 %v1049, %v1056
          %v1062 = vsub.f32 %v1050, %v1058
          %v1063 = vadd.f32 %v1061, 1e-05
          %v1064 = vadd.f32 %v1062, 1e-05
          %v1065 = vrsqrt.pop %v1063
          %v1066 = vrsqrt.pop %v1064
          %vm1067 = vcmask 7168
          %v1068 = vsel %vm1067, %v1049, %v1065
          %v1069 = vsel %vm1067, %v1050, %v1066
          %vm1070 = vcmask 130048
          %v1072 = vsel %vm1070, %v927, 0
          %v1075 = vsel %vm1070, %v928, 0
          %v1078 = vsel %vm1070, %v929, 0
          %v1081 = vsel %vm1070, %v930, 0
          %1083 = vmatprep.subr.mxu0 0.0
          %1084 = vmatpush1.msra.mxu0 0.0
          %1085 = vmatprep.subr.mxu0 0.0
          %1086 = vmatpush1.msra.mxu0 0.0
          %1087 = vmatprep.subr.mxu0 0.0
          %1088 = vmatpush1.msra.mxu0 0.0
          %1089 = vmatprep.subr.mxu0 0.0
          %1090 = vmatpush1.msra.mxu0 0.0
          %1091 = vmatprep.subr.mxu0 0.0
          %1092 = vmatpush1.msra.mxu0 0.0
          %1093 = vmatprep.subr.mxu0 0.0
          %1094 = vmatpush1.msra.mxu0 0.0
          %1095 = vmatprep.subr.mxu0 0.0
          %1096 = vmatpush1.msra.mxu0 0.0
          %1097 = vmatprep.subr.mxu0 0.0
          %1098 = vmatpush1.msra.mxu0 0.0
          %1099 = vmatprep.subr.mxu0 0.0
          %1100 = vmatpush1.msra.mxu0 0.0
          %1101 = vmatprep.subr.mxu0 0.0
          %1102 = vmatpush1.msra.mxu0 0.0
          %1103 = vmatprep.subr.mxu0 0.0
          %1104 = vmatpush1.msra.mxu0 0.0
          %1105 = vmatprep.subr.mxu0 0.0
          %1106 = vmatpush1.msra.mxu0 0.0
          %1107 = vmatprep.subr.mxu0 0.0
          %1108 = vmatpush1.msra.mxu0 0.0
          %1109 = vmatprep.subr.mxu0 0.0
          %1110 = vmatpush1.msra.mxu0 0.0
          %1111 = vmatprep.subr.mxu0 0.0
          %1112 = vmatpush1.msra.mxu0 %v1069
          %1113 = vmatprep.subr.mxu0 0.0
          %1114 = vmatpush1.msra.mxu0 %v1068
          %1115 = vmatprep.subr.mxu0 0.0
          %1116 = vmatpush2.msra.mxu0 0.0
          %1117 = vmatprep.subr.mxu0 0.0
          %1118 = vmatpush2.msra.mxu0 0.0
          %1119 = vmatprep.subr.mxu0 0.0
          %1120 = vmatpush2.msra.mxu0 0.0
          %1121 = vmatprep.subr.mxu0 0.0
          %1122 = vmatpush2.msra.mxu0 0.0
          %1123 = vmatprep.subr.mxu0 0.0
          %1124 = vmatpush2.msra.mxu0 0.0
          %1125 = vmatprep.subr.mxu0 0.0
          %1126 = vmatpush2.msra.mxu0 0.0
          %1127 = vmatprep.subr.mxu0 0.0
          %1128 = vmatpush2.msra.mxu0 0.0
          %1129 = vmatprep.subr.mxu0 0.0
          %1130 = vmatpush2.msra.mxu0 0.0
          %1131 = vmatprep.subr.mxu0 0.0
          %1132 = vmatpush2.msra.mxu0 0.0
          %1133 = vmatprep.subr.mxu0 0.0
          %1134 = vmatpush2.msra.mxu0 0.0
          %1135 = vmatprep.subr.mxu0 0.0
          %1136 = vmatpush2.msra.mxu0 0.0
          %1137 = vmatprep.subr.mxu0 0.0
          %1138 = vmatpush2.msra.mxu0 0.0
          %1139 = vmatprep.subr.mxu0 0.0
          %1140 = vmatpush2.msra.mxu0 0.0
          %1141 = vmatprep.subr.mxu0 0.0
          %1142 = vmatpush2.msra.mxu0 0.0
          %1143 = vmatprep.subr.mxu0 0.0
          %1144 = vmatpush2.msra.mxu0 0.0
          %1145 = vmatprep.subr.mxu0 0.0
          %1146 = vmatpush2.msra.mxu0 0.0
          %1147 = vmatprep.mubr.f32.mxu0 0.0
          %1148 = vmatmul.mubr.f32.gmra.mxu0 %v1072
          %v1149 = vpop.f32.mrf.mxu0
          %v1150 = vadd.f32 0.0, %v1149
          %v1151 = vpop.f32.mrf.mxu0
          %1152 = vmatprep.mubr.f32.mxu0 0.0
          %1153 = vmatmul.mubr.f32.gmra.mxu0 %v1075
          %v1154 = vpop.f32.mrf.mxu0
          %v1155 = vadd.f32 0.0, %v1154
          %v1156 = vpop.f32.mrf.mxu0
          %1157 = vmatprep.mubr.f32.mxu0 0.0
          %1158 = vmatmul.mubr.f32.gmra.mxu0 %v1078
          %v1159 = vpop.f32.mrf.mxu0
          %v1160 = vadd.f32 0.0, %v1159
          %v1161 = vpop.f32.mrf.mxu0
          %1162 = vmatprep.mubr.f32.mxu0 0.0
          %1163 = vmatmul.mubr.f32.gmra.mxu0 %v1081
          %v1164 = vpop.f32.mrf.mxu0
          %v1165 = vadd.f32 0.0, %v1164
          %v1166 = vpop.f32.mrf.mxu0
          %1167 = vdwg.mxu0
          %v1168 = vld [vmem:[%s7] sm:$0xff]
          %v1169 = vld [vmem:[%s7 + $0x8] sm:$0xff]
          %v1170 = vld [vmem:[%s7 + $0x10] sm:$0xff]
          %v1171 = vld [vmem:[%s7 + $0x18] sm:$0xff]
          %1176 = vrot.lane.b32.xlu0 %v1168, 1
          %v1177 = vpop.permute.xlu0 %1176
          %1178 = vrot.lane.b32.xlu0 %v1169, 1
          %v1179 = vpop.permute.xlu0 %1178
          %1180 = vrot.lane.b32.xlu0 %v1170, 1
          %v1181 = vpop.permute.xlu0 %1180
          %1182 = vrot.lane.b32.xlu0 %v1171, 1
          %v1183 = vpop.permute.xlu0 %1182
          %v1188 = vmul.f32 %v1150, %v1177
          %v1189 = vmul.f32 %v1155, %v1179
          %v1190 = vmul.f32 %v1160, %v1181
          %v1191 = vmul.f32 %v1165, %v1183
          %1196 = vrot.lane.b32.xlu0 %v1188, 127
          %v1197 = vpop.permute.xlu0 %1196
          %1198 = vrot.lane.b32.xlu0 %v1189, 127
          %v1199 = vpop.permute.xlu0 %1198
          %1200 = vrot.lane.b32.xlu0 %v1190, 127
          %v1201 = vpop.permute.xlu0 %1200
          %1202 = vrot.lane.b32.xlu0 %v1191, 127
          %v1203 = vpop.permute.xlu0 %1202
          %v1208 = vmul.f32 %v1150, %v1197
          %v1209 = vmul.f32 %v1155, %v1199
          %v1210 = vmul.f32 %v1160, %v1201
          %v1211 = vmul.f32 %v1165, %v1203
          %1216 = vrot.lane.b32.xlu0 %v1208, 1
          %v1217 = vpop.permute.xlu0 %1216
          %1218 = vrot.lane.b32.xlu0 %v1209, 1
          %v1219 = vpop.permute.xlu0 %1218
          %1220 = vrot.lane.b32.xlu0 %v1210, 1
          %v1221 = vpop.permute.xlu0 %1220
          %1222 = vrot.lane.b32.xlu0 %v1211, 1
          %v1223 = vpop.permute.xlu0 %1222
          %v1228 = vsub.f32 %v1168, %v1217
          %v1229 = vsub.f32 %v1169, %v1219
          %v1230 = vsub.f32 %v1170, %v1221
          %v1231 = vsub.f32 %v1171, %v1223
          %v1232 = vsel %vm1067, %v1197, %v1228
          %v1233 = vsel %vm1067, %v1199, %v1229
          %v1234 = vsel %vm1067, %v1201, %v1230
          %v1235 = vsel %vm1067, %v1203, %v1231
          %vm1236 = vcmask 15360
          %1237 = vst.msk [vmem:[#allocation3] sm:$0xff] %vm1236, %v1232
          %1238 = vst.msk [vmem:[#allocation3 + $0x8] sm:$0xff] %vm1236, %v1233
          %1239 = vst.msk [vmem:[#allocation3 + $0x10] sm:$0xff] %vm1236, %v1234
          %1240 = vst.msk [vmem:[#allocation3 + $0x18] sm:$0xff] %vm1236, %v1235
        $region84: #{tpu_custom_call.1} parent=71 // pred_fallthru
          _
        // Predicated region
        $region85: #{tpu_custom_call.1} parent=71 // pred_check
          %p1241 = pneg %p922
        $region86: #{tpu_custom_call.1} parent=71 // pred_check_branch
          %1243 = sbr.rel (%p1241) target = $region88
        $region87: #{tpu_custom_call.1} parent=71 // pred_region
          %v1244 = vld [vmem:[%s3] sm:$0xff]
          %v1245 = vld [vmem:[%s3 + $0x8] sm:$0xff]
          %v1246 = vld [vmem:[%s3 + $0x10] sm:$0xff]
          %v1247 = vld [vmem:[%s3 + $0x18] sm:$0xff]
          %v1248 = vld [vmem:[%s521] sm:$0xf]
          %v1249 = vld [vmem:[%s4] sm:$0xff]
          %v1250 = vld [vmem:[%s4 + $0x8] sm:$0xff]
          %v1251 = vld [vmem:[%s4 + $0x10] sm:$0xff]
          %v1252 = vld [vmem:[%s4 + $0x18] sm:$0xff]
          %v1253 = vld [vmem:[%s529] sm:$0xf]
          %vm1254 = vcmask 31744
          %v1256 = vsel %vm1254, %v1249, 0
          %v1259 = vsel %vm1254, %v1250, 0
          %v1262 = vsel %vm1254, %v1251, 0
          %v1265 = vsel %vm1254, %v1252, 0
          %vm1267 = vcmask 1043456
          %v1269 = vsel %vm1267, %v1253, 0
          %1271 = vmatprep.subr.mxu0 0.0
          %1272 = vmatpush1.msra.mxu0 0.0
          %1273 = vmatprep.subr.mxu0 0.0
          %1274 = vmatpush1.msra.mxu0 0.0
          %1275 = vmatprep.subr.mxu0 0.0
          %1276 = vmatpush1.msra.mxu0 0.0
          %1277 = vmatprep.subr.mxu0 0.0
          %1278 = vmatpush1.msra.mxu0 0.0
          %1279 = vmatprep.subr.mxu0 0.0
          %1280 = vmatpush1.msra.mxu0 0.0
          %1281 = vmatprep.subr.mxu0 0.0
          %1282 = vmatpush1.msra.mxu0 0.0
          %1283 = vmatprep.subr.mxu0 0.0
          %1284 = vmatpush1.msra.mxu0 0.0
          %1285 = vmatprep.subr.mxu0 0.0
          %1286 = vmatpush1.msra.mxu0 0.0
          %1287 = vmatprep.subr.mxu0 0.0
          %1288 = vmatpush1.msra.mxu0 0.0
          %1289 = vmatprep.subr.mxu0 0.0
          %1290 = vmatpush1.msra.mxu0 0.0
          %1291 = vmatprep.subr.mxu0 0.0
          %1292 = vmatpush1.msra.mxu0 0.0
          %1293 = vmatprep.subr.mxu0 0.0
          %1294 = vmatpush1.msra.mxu0 0.0
          %1295 = vmatprep.subr.mxu0 0.0
          %1296 = vmatpush1.msra.mxu0 0.0
          %1297 = vmatprep.subr.mxu0 0.0
          %1298 = vmatpush1.msra.mxu0 0.0
          %1299 = vmatprep.subr.mxu0 0.0
          %1300 = vmatpush1.msra.mxu0 0.0
          %1301 = vmatprep.subr.mxu0 0.0
          %1302 = vmatpush1.msra.mxu0 %v1269
          %1303 = vmatprep.subr.mxu0 0.0
          %1304 = vmatpush2.msra.mxu0 0.0
          %1305 = vmatprep.subr.mxu0 0.0
          %1306 = vmatpush2.msra.mxu0 0.0
          %1307 = vmatprep.subr.mxu0 0.0
          %1308 = vmatpush2.msra.mxu0 0.0
          %1309 = vmatprep.subr.mxu0 0.0
          %1310 = vmatpush2.msra.mxu0 0.0
          %1311 = vmatprep.subr.mxu0 0.0
          %1312 = vmatpush2.msra.mxu0 0.0
          %1313 = vmatprep.subr.mxu0 0.0
          %1314 = vmatpush2.msra.mxu0 0.0
          %1315 = vmatprep.subr.mxu0 0.0
          %1316 = vmatpush2.msra.mxu0 0.0
          %1317 = vmatprep.subr.mxu0 0.0
          %1318 = vmatpush2.msra.mxu0 0.0
          %1319 = vmatprep.subr.mxu0 0.0
          %1320 = vmatpush2.msra.mxu0 0.0
          %1321 = vmatprep.subr.mxu0 0.0
          %1322 = vmatpush2.msra.mxu0 0.0
          %1323 = vmatprep.subr.mxu0 0.0
          %1324 = vmatpush2.msra.mxu0 0.0
          %1325 = vmatprep.subr.mxu0 0.0
          %1326 = vmatpush2.msra.mxu0 0.0
          %1327 = vmatprep.subr.mxu0 0.0
          %1328 = vmatpush2.msra.mxu0 0.0
          %1329 = vmatprep.subr.mxu0 0.0
          %1330 = vmatpush2.msra.mxu0 0.0
          %1331 = vmatprep.subr.mxu0 0.0
          %1332 = vmatpush2.msra.mxu0 0.0
          %1333 = vmatprep.subr.mxu0 0.0
          %1334 = vmatpush2.msra.mxu0 0.0
          %1335 = vmatprep.mubr.f32.mxu0 0.0
          %1336 = vmatmul.mubr.f32.gmra.mxu0 %v1256
          %v1337 = vpop.f32.mrf.mxu0
          %v1338 = vadd.f32 0.0, %v1337
          %v1339 = vpop.f32.mrf.mxu0
          %1340 = vmatprep.mubr.f32.mxu0 0.0
          %1341 = vmatmul.mubr.f32.gmra.mxu0 %v1259
          %v1342 = vpop.f32.mrf.mxu0
          %v1343 = vadd.f32 0.0, %v1342
          %v1344 = vpop.f32.mrf.mxu0
          %1345 = vmatprep.mubr.f32.mxu0 0.0
          %1346 = vmatmul.mubr.f32.gmra.mxu0 %v1262
          %v1347 = vpop.f32.mrf.mxu0
          %v1348 = vadd.f32 0.0, %v1347
          %v1349 = vpop.f32.mrf.mxu0
          %1350 = vmatprep.mubr.f32.mxu0 0.0
          %1351 = vmatmul.mubr.f32.gmra.mxu0 %v1265
          %v1352 = vpop.f32.mrf.mxu0
          %v1353 = vadd.f32 0.0, %v1352
          %v1354 = vpop.f32.mrf.mxu0
          %1355 = vdwg.mxu0
          %v1357 = vsel %vm1254, %v1244, 0
          %v1360 = vsel %vm1254, %v1245, 0
          %v1363 = vsel %vm1254, %v1246, 0
          %v1366 = vsel %vm1254, %v1247, 0
          %v1369 = vsel %vm1267, %v1248, 0
          %1371 = vmatprep.subr.mxu0 0.0
          %1372 = vmatpush1.msra.mxu0 0.0
          %1373 = vmatprep.subr.mxu0 0.0
          %1374 = vmatpush1.msra.mxu0 0.0
          %1375 = vmatprep.subr.mxu0 0.0
          %1376 = vmatpush1.msra.mxu0 0.0
          %1377 = vmatprep.subr.mxu0 0.0
          %1378 = vmatpush1.msra.mxu0 0.0
          %1379 = vmatprep.subr.mxu0 0.0
          %1380 = vmatpush1.msra.mxu0 0.0
          %1381 = vmatprep.subr.mxu0 0.0
          %1382 = vmatpush1.msra.mxu0 0.0
          %1383 = vmatprep.subr.mxu0 0.0
          %1384 = vmatpush1.msra.mxu0 0.0
          %1385 = vmatprep.subr.mxu0 0.0
          %1386 = vmatpush1.msra.mxu0 0.0
          %1387 = vmatprep.subr.mxu0 0.0
          %1388 = vmatpush1.msra.mxu0 0.0
          %1389 = vmatprep.subr.mxu0 0.0
          %1390 = vmatpush1.msra.mxu0 0.0
          %1391 = vmatprep.subr.mxu0 0.0
          %1392 = vmatpush1.msra.mxu0 0.0
          %1393 = vmatprep.subr.mxu0 0.0
          %1394 = vmatpush1.msra.mxu0 0.0
          %1395 = vmatprep.subr.mxu0 0.0
          %1396 = vmatpush1.msra.mxu0 0.0
          %1397 = vmatprep.subr.mxu0 0.0
          %1398 = vmatpush1.msra.mxu0 0.0
          %1399 = vmatprep.subr.mxu0 0.0
          %1400 = vmatpush1.msra.mxu0 0.0
          %1401 = vmatprep.subr.mxu0 0.0
          %1402 = vmatpush1.msra.mxu0 %v1369
          %1403 = vmatprep.subr.mxu0 0.0
          %1404 = vmatpush2.msra.mxu0 0.0
          %1405 = vmatprep.subr.mxu0 0.0
          %1406 = vmatpush2.msra.mxu0 0.0
          %1407 = vmatprep.subr.mxu0 0.0
          %1408 = vmatpush2.msra.mxu0 0.0
          %1409 = vmatprep.subr.mxu0 0.0
          %1410 = vmatpush2.msra.mxu0 0.0
          %1411 = vmatprep.subr.mxu0 0.0
          %1412 = vmatpush2.msra.mxu0 0.0
          %1413 = vmatprep.subr.mxu0 0.0
          %1414 = vmatpush2.msra.mxu0 0.0
          %1415 = vmatprep.subr.mxu0 0.0
          %1416 = vmatpush2.msra.mxu0 0.0
          %1417 = vmatprep.subr.mxu0 0.0
          %1418 = vmatpush2.msra.mxu0 0.0
          %1419 = vmatprep.subr.mxu0 0.0
          %1420 = vmatpush2.msra.mxu0 0.0
          %1421 = vmatprep.subr.mxu0 0.0
          %1422 = vmatpush2.msra.mxu0 0.0
          %1423 = vmatprep.subr.mxu0 0.0
          %1424 = vmatpush2.msra.mxu0 0.0
          %1425 = vmatprep.subr.mxu0 0.0
          %1426 = vmatpush2.msra.mxu0 0.0
          %1427 = vmatprep.subr.mxu0 0.0
          %1428 = vmatpush2.msra.mxu0 0.0
          %1429 = vmatprep.subr.mxu0 0.0
          %1430 = vmatpush2.msra.mxu0 0.0
          %1431 = vmatprep.subr.mxu0 0.0
          %1432 = vmatpush2.msra.mxu0 0.0
          %1433 = vmatprep.subr.mxu0 0.0
          %1434 = vmatpush2.msra.mxu0 0.0
          %1435 = vmatprep.mubr.f32.mxu0 0.0
          %1436 = vmatmul.mubr.f32.gmra.mxu0 %v1357
          %v1437 = vpop.f32.mrf.mxu0
          %v1438 = vadd.f32 %v1338, %v1437
          %v1439 = vpop.f32.mrf.mxu0
          %1440 = vmatprep.mubr.f32.mxu0 0.0
          %1441 = vmatmul.mubr.f32.gmra.mxu0 %v1360
          %v1442 = vpop.f32.mrf.mxu0
          %v1443 = vadd.f32 %v1343, %v1442
          %v1444 = vpop.f32.mrf.mxu0
          %1445 = vmatprep.mubr.f32.mxu0 0.0
          %1446 = vmatmul.mubr.f32.gmra.mxu0 %v1363
          %v1447 = vpop.f32.mrf.mxu0
          %v1448 = vadd.f32 %v1348, %v1447
          %v1449 = vpop.f32.mrf.mxu0
          %1450 = vmatprep.mubr.f32.mxu0 0.0
          %1451 = vmatmul.mubr.f32.gmra.mxu0 %v1366
          %v1452 = vpop.f32.mrf.mxu0
          %v1453 = vadd.f32 %v1353, %v1452
          %v1454 = vpop.f32.mrf.mxu0
          %1455 = vdwg.mxu0
          %v1456 = vld [vmem:[%s5] sm:$0xff]
          %v1457 = vld [vmem:[%s5 + $0x8] sm:$0xff]
          %v1458 = vld [vmem:[%s5 + $0x10] sm:$0xff]
          %v1459 = vld [vmem:[%s5 + $0x18] sm:$0xff]
          %v1460 = vld [vmem:[%s537] sm:$0xff]
          %vm1461 = vcmask 64512
          %v1463 = vsel %vm1461, %v1456, 0
          %v1466 = vsel %vm1461, %v1457, 0
          %v1469 = vsel %vm1461, %v1458, 0
          %v1472 = vsel %vm1461, %v1459, 0
          %1474 = vmatprep.subr.mxu0 0.0
          %1475 = vmatpush1.msra.mxu0 0.0
          %1476 = vmatprep.subr.mxu0 0.0
          %1477 = vmatpush1.msra.mxu0 0.0
          %1478 = vmatprep.subr.mxu0 0.0
          %1479 = vmatpush1.msra.mxu0 0.0
          %1480 = vmatprep.subr.mxu0 0.0
          %1481 = vmatpush1.msra.mxu0 0.0
          %1482 = vmatprep.subr.mxu0 0.0
          %1483 = vmatpush1.msra.mxu0 0.0
          %1484 = vmatprep.subr.mxu0 0.0
          %1485 = vmatpush1.msra.mxu0 0.0
          %1486 = vmatprep.subr.mxu0 0.0
          %1487 = vmatpush1.msra.mxu0 0.0
          %1488 = vmatprep.subr.mxu0 0.0
          %1489 = vmatpush1.msra.mxu0 0.0
          %1490 = vmatprep.subr.mxu0 0.0
          %1491 = vmatpush1.msra.mxu0 0.0
          %1492 = vmatprep.subr.mxu0 0.0
          %1493 = vmatpush1.msra.mxu0 0.0
          %1494 = vmatprep.subr.mxu0 0.0
          %1495 = vmatpush1.msra.mxu0 0.0
          %1496 = vmatprep.subr.mxu0 0.0
          %1497 = vmatpush1.msra.mxu0 0.0
          %1498 = vmatprep.subr.mxu0 0.0
          %1499 = vmatpush1.msra.mxu0 0.0
          %1500 = vmatprep.subr.mxu0 0.0
          %1501 = vmatpush1.msra.mxu0 0.0
          %1502 = vmatprep.subr.mxu0 0.0
          %1503 = vmatpush1.msra.mxu0 0.0
          %1504 = vmatprep.subr.mxu0 0.0
          %1505 = vmatpush1.msra.mxu0 %v1460
          %1506 = vmatprep.subr.mxu0 0.0
          %1507 = vmatpush2.msra.mxu0 0.0
          %1508 = vmatprep.subr.mxu0 0.0
          %1509 = vmatpush2.msra.mxu0 0.0
          %1510 = vmatprep.subr.mxu0 0.0
          %1511 = vmatpush2.msra.mxu0 0.0
          %1512 = vmatprep.subr.mxu0 0.0
          %1513 = vmatpush2.msra.mxu0 0.0
          %1514 = vmatprep.subr.mxu0 0.0
          %1515 = vmatpush2.msra.mxu0 0.0
          %1516 = vmatprep.subr.mxu0 0.0
          %1517 = vmatpush2.msra.mxu0 0.0
          %1518 = vmatprep.subr.mxu0 0.0
          %1519 = vmatpush2.msra.mxu0 0.0
          %1520 = vmatprep.subr.mxu0 0.0
          %1521 = vmatpush2.msra.mxu0 0.0
          %1522 = vmatprep.subr.mxu0 0.0
          %1523 = vmatpush2.msra.mxu0 0.0
          %1524 = vmatprep.subr.mxu0 0.0
          %1525 = vmatpush2.msra.mxu0 0.0
          %1526 = vmatprep.subr.mxu0 0.0
          %1527 = vmatpush2.msra.mxu0 0.0
          %1528 = vmatprep.subr.mxu0 0.0
          %1529 = vmatpush2.msra.mxu0 0.0
          %1530 = vmatprep.subr.mxu0 0.0
          %1531 = vmatpush2.msra.mxu0 0.0
          %1532 = vmatprep.subr.mxu0 0.0
          %1533 = vmatpush2.msra.mxu0 0.0
          %1534 = vmatprep.subr.mxu0 0.0
          %1535 = vmatpush2.msra.mxu0 0.0
          %1536 = vmatprep.subr.mxu0 0.0
          %1537 = vmatpush2.msra.mxu0 0.0
          %1538 = vmatprep.mubr.f32.mxu0 0.0
          %1539 = vmatmul.mubr.f32.gmra.mxu0 %v1463
          %v1540 = vpop.f32.mrf.mxu0
          %v1541 = vadd.f32 0.0, %v1540
          %v1542 = vpop.f32.mrf.mxu0
          %1543 = vmatprep.mubr.f32.mxu0 0.0
          %1544 = vmatmul.mubr.f32.gmra.mxu0 %v1466
          %v1545 = vpop.f32.mrf.mxu0
          %v1546 = vadd.f32 0.0, %v1545
          %v1547 = vpop.f32.mrf.mxu0
          %1548 = vmatprep.mubr.f32.mxu0 0.0
          %1549 = vmatmul.mubr.f32.gmra.mxu0 %v1469
          %v1550 = vpop.f32.mrf.mxu0
          %v1551 = vadd.f32 0.0, %v1550
          %v1552 = vpop.f32.mrf.mxu0
          %1553 = vmatprep.mubr.f32.mxu0 0.0
          %1554 = vmatmul.mubr.f32.gmra.mxu0 %v1472
          %v1555 = vpop.f32.mrf.mxu0
          %v1556 = vadd.f32 0.0, %v1555
          %v1557 = vpop.f32.mrf.mxu0
          %1558 = vdwg.mxu0
          %v1559 = vadd.f32 %v1438, %v1541
          %v1560 = vadd.f32 %v1443, %v1546
          %v1561 = vadd.f32 %v1448, %v1551
          %v1562 = vadd.f32 %v1453, %v1556
          %v1563 = vld [vmem:[#allocation3] sm:$0xff]
          %v1564 = vld [vmem:[#allocation3 + $0x8] sm:$0xff]
          %v1565 = vld [vmem:[#allocation3 + $0x10] sm:$0xff]
          %v1566 = vld [vmem:[#allocation3 + $0x18] sm:$0xff]
          %1568 = vset.pattern.permute.xlu0 0
          %1569 = vperm.xlu0 %1568, %v1563
          %v1570 = vpop.permute.xlu0 %1569
          %1573 = vset.pattern.permute.xlu0 0
          %1574 = vperm.xlu0 %1573, %v1564
          %v1575 = vpop.permute.xlu0 %1574
          %1578 = vset.pattern.permute.xlu0 0
          %1579 = vperm.xlu0 %1578, %v1565
          %v1580 = vpop.permute.xlu0 %1579
          %1583 = vset.pattern.permute.xlu0 0
          %1584 = vperm.xlu0 %1583, %v1566
          %v1585 = vpop.permute.xlu0 %1584
          %v1587 = vmul.f32 %v1559, %v1570
          %v1588 = vmul.f32 %v1560, %v1575
          %v1589 = vmul.f32 %v1561, %v1580
          %v1590 = vmul.f32 %v1562, %v1585
          %1591 = vset.pattern.permute.xlu0 1
          %1592 = vperm.xlu0 %1591, %v1563
          %v1593 = vpop.permute.xlu0 %1592
          %1595 = vset.pattern.permute.xlu0 1
          %1596 = vperm.xlu0 %1595, %v1564
          %v1597 = vpop.permute.xlu0 %1596
          %1599 = vset.pattern.permute.xlu0 1
          %1600 = vperm.xlu0 %1599, %v1565
          %v1601 = vpop.permute.xlu0 %1600
          %1603 = vset.pattern.permute.xlu0 1
          %1604 = vperm.xlu0 %1603, %v1566
          %v1605 = vpop.permute.xlu0 %1604
          %v1607 = vadd.f32 %v1587, %v1593
          %v1608 = vadd.f32 %v1588, %v1597
          %v1609 = vadd.f32 %v1589, %v1601
          %v1610 = vadd.f32 %v1590, %v1605
          %v1611 = vmax.f32 %v1607, 0.0
          %v1612 = vmax.f32 %v1608, 0.0
          %v1613 = vmax.f32 %v1609, 0.0
          %v1614 = vmax.f32 %v1610, 0.0
          %v1615 = vld [vmem:[%s8] sm:$0xff]
          %v1616 = vld [vmem:[%s8 + $0x8] sm:$0xff]
          %v1617 = vld [vmem:[%s8 + $0x10] sm:$0xff]
          %v1618 = vld [vmem:[%s8 + $0x18] sm:$0xff]
          %v1619 = vld [vmem:[%s8 + $0x20] sm:$0xff]
          %v1620 = vld [vmem:[%s9] sm:$0xff]
          %v1621 = vld [vmem:[%s9 + $0x8] sm:$0xff]
          %v1622 = vld [vmem:[%s9 + $0x10] sm:$0xff]
          %v1623 = vld [vmem:[%s9 + $0x18] sm:$0xff]
          %v1624 = vld [vmem:[%s9 + $0x20] sm:$0xff]
          %1626 = vset.pattern.permute.xlu0 0
          %1627 = vperm.xlu0 %1626, %v1620
          %v1628 = vpop.permute.xlu0 %1627
          %1631 = vset.pattern.permute.xlu0 0
          %1632 = vperm.xlu0 %1631, %v1621
          %v1633 = vpop.permute.xlu0 %1632
          %1636 = vset.pattern.permute.xlu0 0
          %1637 = vperm.xlu0 %1636, %v1622
          %v1638 = vpop.permute.xlu0 %1637
          %1641 = vset.pattern.permute.xlu0 0
          %1642 = vperm.xlu0 %1641, %v1623
          %v1643 = vpop.permute.xlu0 %1642
          %1646 = vset.pattern.permute.xlu0 0
          %1647 = vperm.xlu0 %1646, %v1624
          %v1648 = vpop.permute.xlu0 %1647
          %vm1650 = vcmask 261120
          %v1652 = vsel %vm1650, %v1615, 0
          %v1655 = vsel %vm1650, %v1616, 0
          %v1658 = vsel %vm1650, %v1617, 0
          %v1661 = vsel %vm1650, %v1618, 0
          %v1664 = vsel %vm1650, %v1619, 0
          %1666 = vmatprep.subr.mxu0 0.0
          %1667 = vmatpush1.msra.mxu0 0.0
          %1668 = vmatprep.subr.mxu0 0.0
          %1669 = vmatpush1.msra.mxu0 0.0
          %1670 = vmatprep.subr.mxu0 0.0
          %1671 = vmatpush1.msra.mxu0 0.0
          %1672 = vmatprep.subr.mxu0 0.0
          %1673 = vmatpush1.msra.mxu0 0.0
          %1674 = vmatprep.subr.mxu0 0.0
          %1675 = vmatpush1.msra.mxu0 0.0
          %1676 = vmatprep.subr.mxu0 0.0
          %1677 = vmatpush1.msra.mxu0 0.0
          %1678 = vmatprep.subr.mxu0 0.0
          %1679 = vmatpush1.msra.mxu0 0.0
          %1680 = vmatprep.subr.mxu0 0.0
          %1681 = vmatpush1.msra.mxu0 0.0
          %1682 = vmatprep.subr.mxu0 0.0
          %1683 = vmatpush1.msra.mxu0 0.0
          %1684 = vmatprep.subr.mxu0 0.0
          %1685 = vmatpush1.msra.mxu0 0.0
          %1686 = vmatprep.subr.mxu0 0.0
          %1687 = vmatpush1.msra.mxu0 0.0
          %1688 = vmatprep.subr.mxu0 0.0
          %1689 = vmatpush1.msra.mxu0 0.0
          %1690 = vmatprep.subr.mxu0 0.0
          %1691 = vmatpush1.msra.mxu0 %v1614
          %1692 = vmatprep.subr.mxu0 0.0
          %1693 = vmatpush1.msra.mxu0 %v1613
          %1694 = vmatprep.subr.mxu0 0.0
          %1695 = vmatpush1.msra.mxu0 %v1612
          %1696 = vmatprep.subr.mxu0 0.0
          %1697 = vmatpush1.msra.mxu0 %v1611
          %1698 = vmatprep.subr.mxu0 0.0
          %1699 = vmatpush2.msra.mxu0 0.0
          %1700 = vmatprep.subr.mxu0 0.0
          %1701 = vmatpush2.msra.mxu0 0.0
          %1702 = vmatprep.subr.mxu0 0.0
          %1703 = vmatpush2.msra.mxu0 0.0
          %1704 = vmatprep.subr.mxu0 0.0
          %1705 = vmatpush2.msra.mxu0 0.0
          %1706 = vmatprep.subr.mxu0 0.0
          %1707 = vmatpush2.msra.mxu0 0.0
          %1708 = vmatprep.subr.mxu0 0.0
          %1709 = vmatpush2.msra.mxu0 0.0
          %1710 = vmatprep.subr.mxu0 0.0
          %1711 = vmatpush2.msra.mxu0 0.0
          %1712 = vmatprep.subr.mxu0 0.0
          %1713 = vmatpush2.msra.mxu0 0.0
          %1714 = vmatprep.subr.mxu0 0.0
          %1715 = vmatpush2.msra.mxu0 0.0
          %1716 = vmatprep.subr.mxu0 0.0
          %1717 = vmatpush2.msra.mxu0 0.0
          %1718 = vmatprep.subr.mxu0 0.0
          %1719 = vmatpush2.msra.mxu0 0.0
          %1720 = vmatprep.subr.mxu0 0.0
          %1721 = vmatpush2.msra.mxu0 0.0
          %1722 = vmatprep.subr.mxu0 0.0
          %1723 = vmatpush2.msra.mxu0 0.0
          %1724 = vmatprep.subr.mxu0 0.0
          %1725 = vmatpush2.msra.mxu0 0.0
          %1726 = vmatprep.subr.mxu0 0.0
          %1727 = vmatpush2.msra.mxu0 0.0
          %1728 = vmatprep.subr.mxu0 0.0
          %1729 = vmatpush2.msra.mxu0 0.0
          %1730 = vmatprep.mubr.f32.mxu0 0.0
          %1731 = vmatmul.mubr.f32.gmra.mxu0 %v1652
          %v1732 = vpop.f32.mrf.mxu0
          %v1733 = vadd.f32 %v1628, %v1732
          %v1734 = vpop.f32.mrf.mxu0
          %1735 = vmatprep.mubr.f32.mxu0 0.0
          %1736 = vmatmul.mubr.f32.gmra.mxu0 %v1655
          %v1737 = vpop.f32.mrf.mxu0
          %v1738 = vadd.f32 %v1633, %v1737
          %v1739 = vpop.f32.mrf.mxu0
          %1740 = vmatprep.mubr.f32.mxu0 0.0
          %1741 = vmatmul.mubr.f32.gmra.mxu0 %v1658
          %v1742 = vpop.f32.mrf.mxu0
          %v1743 = vadd.f32 %v1638, %v1742
          %v1744 = vpop.f32.mrf.mxu0
          %1745 = vmatprep.mubr.f32.mxu0 0.0
          %1746 = vmatmul.mubr.f32.gmra.mxu0 %v1661
          %v1747 = vpop.f32.mrf.mxu0
          %v1748 = vadd.f32 %v1643, %v1747
          %v1749 = vpop.f32.mrf.mxu0
          %1750 = vmatprep.mubr.f32.mxu0 0.0
          %1751 = vmatmul.mubr.f32.gmra.mxu0 %v1664
          %v1752 = vpop.f32.mrf.mxu0
          %v1753 = vadd.f32 %v1648, %v1752
          %v1754 = vpop.f32.mrf.mxu0
          %1755 = vdwg.mxu0
          %v1756 = vmul.f32 %v1733, %v1733
          %v1757 = vrot.slane %v1756, 4
          %v1758 = vadd.f32 %v1756, %v1757
          %v1759 = vrot.slane %v1758, 2
          %v1760 = vadd.f32 %v1758, %v1759
          %v1761 = vrot.slane %v1760, 1
          %v1762 = vadd.f32 %v1760, %v1761
          %v1763 = vrsqrt.pop %v1762
          %v1764 = vmul.f32 %v1733, %v1763
          %v1765 = vld [vmem:[#allocation4] sm:$0xff]
          %1766 = vadd.xlane.f32.xlu0 %v1764
          %v1767 = vpop.xlane.xlu0 %1766
          %v1768 = vadd.f32 %v1765, %v1767
          %vm1769 = vcmask 7168
          %1770 = vst.msk [vmem:[#allocation4] sm:$0xff] %vm1769, %v1768
          %v1771 = vld [vmem:[#allocation5] sm:$0xff]
          %v1772 = vld [vmem:[#allocation5 + $0x8] sm:$0xff]
          %v1773 = vld [vmem:[#allocation5 + $0x10] sm:$0xff]
          %v1774 = vld [vmem:[#allocation5 + $0x18] sm:$0xff]
          %1775 = vadd.xlane.f32.xlu0 %v1738
          %v1776 = vpop.xlane.xlu0 %1775
          %1777 = vadd.xlane.f32.xlu0 %v1743
          %v1778 = vpop.xlane.xlu0 %1777
          %1779 = vadd.xlane.f32.xlu0 %v1748
          %v1780 = vpop.xlane.xlu0 %1779
          %1781 = vadd.xlane.f32.xlu0 %v1753
          %v1782 = vpop.xlane.xlu0 %1781
          %v1783 = vadd.f32 %v1771, %v1776
          %v1784 = vadd.f32 %v1772, %v1778
          %v1785 = vadd.f32 %v1773, %v1780
          %v1786 = vadd.f32 %v1774, %v1782
          %1787 = vst.msk [vmem:[#allocation5] sm:$0xff] %vm1769, %v1783
          %1788 = vst.msk [vmem:[#allocation5 + $0x8] sm:$0xff] %vm1769, %v1784
          %1789 = vst.msk [vmem:[#allocation5 + $0x10] sm:$0xff] %vm1769, %v1785
          %1790 = vst.msk [vmem:[#allocation5 + $0x18] sm:$0xff] %vm1769, %v1786
          %v1791 = vld [vmem:[#allocation6] sm:$0xff]
          %v1792 = vld [vmem:[#allocation6 + $0x8] sm:$0xff]
          %v1793 = vld [vmem:[#allocation6 + $0x10] sm:$0xff]
          %v1794 = vld [vmem:[#allocation6 + $0x18] sm:$0xff]
          %1795 = vmatprep.subr.mxu0 0.0
          %1796 = vmatpush1.xpose.msra.mxu0 0.0
          %1797 = vmatprep.subr.mxu0 0.0
          %1798 = vmatpush1.xpose.msra.mxu0 0.0
          %1799 = vmatprep.subr.mxu0 0.0
          %1800 = vmatpush1.xpose.msra.mxu0 0.0
          %1801 = vmatprep.subr.mxu0 0.0
          %1802 = vmatpush1.xpose.msra.mxu0 0.0
          %1803 = vmatprep.subr.mxu0 0.0
          %1804 = vmatpush1.xpose.msra.mxu0 0.0
          %1805 = vmatprep.subr.mxu0 0.0
          %1806 = vmatpush1.xpose.msra.mxu0 0.0
          %1807 = vmatprep.subr.mxu0 0.0
          %1808 = vmatpush1.xpose.msra.mxu0 0.0
          %1809 = vmatprep.subr.mxu0 0.0
          %1810 = vmatpush1.xpose.msra.mxu0 0.0
          %1811 = vmatprep.subr.mxu0 0.0
          %1812 = vmatpush1.xpose.msra.mxu0 0.0
          %1813 = vmatprep.subr.mxu0 0.0
          %1814 = vmatpush1.xpose.msra.mxu0 0.0
          %1815 = vmatprep.subr.mxu0 0.0
          %1816 = vmatpush1.xpose.msra.mxu0 0.0
          %1817 = vmatprep.subr.mxu0 0.0
          %1818 = vmatpush1.xpose.msra.mxu0 0.0
          %1819 = vmatprep.subr.mxu0 0.0
          %1820 = vmatpush1.xpose.msra.mxu0 0.0
          %1821 = vmatprep.subr.mxu0 0.0
          %1822 = vmatpush1.xpose.msra.mxu0 0.0
          %1823 = vmatprep.subr.mxu0 0.0
          %1824 = vmatpush1.xpose.msra.mxu0 0.0
          %1825 = vmatprep.subr.mxu0 0.0
          %1826 = vmatpush1.xpose.msra.mxu0 %v1764
          %1827 = vmatprep.subr.mxu0 0.0
          %1828 = vmatpush2.xpose.msra.mxu0 0.0
          %1829 = vmatprep.subr.mxu0 0.0
          %1830 = vmatpush2.xpose.msra.mxu0 0.0
          %1831 = vmatprep.subr.mxu0 0.0
          %1832 = vmatpush2.xpose.msra.mxu0 0.0
          %1833 = vmatprep.subr.mxu0 0.0
          %1834 = vmatpush2.xpose.msra.mxu0 0.0
          %1835 = vmatprep.subr.mxu0 0.0
          %1836 = vmatpush2.xpose.msra.mxu0 0.0
          %1837 = vmatprep.subr.mxu0 0.0
          %1838 = vmatpush2.xpose.msra.mxu0 0.0
          %1839 = vmatprep.subr.mxu0 0.0
          %1840 = vmatpush2.xpose.msra.mxu0 0.0
          %1841 = vmatprep.subr.mxu0 0.0
          %1842 = vmatpush2.xpose.msra.mxu0 0.0
          %1843 = vmatprep.subr.mxu0 0.0
          %1844 = vmatpush2.xpose.msra.mxu0 0.0
          %1845 = vmatprep.subr.mxu0 0.0
          %1846 = vmatpush2.xpose.msra.mxu0 0.0
          %1847 = vmatprep.subr.mxu0 0.0
          %1848 = vmatpush2.xpose.msra.mxu0 0.0
          %1849 = vmatprep.subr.mxu0 0.0
          %1850 = vmatpush2.xpose.msra.mxu0 0.0
          %1851 = vmatprep.subr.mxu0 0.0
          %1852 = vmatpush2.xpose.msra.mxu0 0.0
          %1853 = vmatprep.subr.mxu0 0.0
          %1854 = vmatpush2.xpose.msra.mxu0 0.0
          %1855 = vmatprep.subr.mxu0 0.0
          %1856 = vmatpush2.xpose.msra.mxu0 0.0
          %1857 = vmatprep.subr.mxu0 0.0
          %1858 = vmatpush2.xpose.msra.mxu0 0.0
          %1859 = vmatprep.mubr.f32.mxu0 0.0
          %1860 = vmatmul.mubr.f32.gmra.mxu0 %v1738
          %v1861 = vpop.f32.mrf.mxu0
          %v1862 = vadd.f32 0.0, %v1861
          %v1863 = vpop.f32.mrf.mxu0
          %1864 = vmatprep.mubr.f32.mxu0 0.0
          %1865 = vmatmul.mubr.f32.gmra.mxu0 %v1743
          %v1866 = vpop.f32.mrf.mxu0
          %v1867 = vadd.f32 0.0, %v1866
          %v1868 = vpop.f32.mrf.mxu0
          %1869 = vmatprep.mubr.f32.mxu0 0.0
          %1870 = vmatmul.mubr.f32.gmra.mxu0 %v1748
          %v1871 = vpop.f32.mrf.mxu0
          %v1872 = vadd.f32 0.0, %v1871
          %v1873 = vpop.f32.mrf.mxu0
          %1874 = vmatprep.mubr.f32.mxu0 0.0
          %1875 = vmatmul.mubr.f32.gmra.mxu0 %v1753
          %v1876 = vpop.f32.mrf.mxu0
          %v1877 = vadd.f32 0.0, %v1876
          %v1878 = vpop.f32.mrf.mxu0
          %1879 = vdwg.mxu0
          %v1880 = vadd.f32 %v1791, %v1862
          %v1881 = vadd.f32 %v1792, %v1867
          %v1882 = vadd.f32 %v1793, %v1872
          %v1883 = vadd.f32 %v1794, %v1877
          %1884 = vst.msk [vmem:[#allocation6] sm:$0xff] %vm1461, %v1880
          %1885 = vst.msk [vmem:[#allocation6 + $0x8] sm:$0xff] %vm1461, %v1881
          %1886 = vst.msk [vmem:[#allocation6 + $0x10] sm:$0xff] %vm1461, %v1882
          %1887 = vst.msk [vmem:[#allocation6 + $0x18] sm:$0xff] %vm1461, %v1883
        $region88: #{tpu_custom_call.1} parent=71 // pred_fallthru
          _
        %p1888 = scmp.eq.s32.totalorder %s34, 2
        // Predicated region
        $region89: #{tpu_custom_call.1} parent=71 // pred_check
          %p1889 = pneg %p1888
        $region90: #{tpu_custom_call.1} parent=71 // pred_check_branch
          %1891 = sbr.rel (%p1889) target = $region92
        $region91: #{tpu_custom_call.1} parent=71 // pred_region
          %v1892 = vld [vmem:[%s3] sm:$0xff]
          %v1893 = vld [vmem:[%s3 + $0x8] sm:$0xff]
          %v1894 = vld [vmem:[%s3 + $0x10] sm:$0xff]
          %v1895 = vld [vmem:[%s3 + $0x18] sm:$0xff]
          %v1896 = vld [vmem:[%s521] sm:$0xf]
          %v1897 = vld [vmem:[%s4] sm:$0xff]
          %v1898 = vld [vmem:[%s4 + $0x8] sm:$0xff]
          %v1899 = vld [vmem:[%s4 + $0x10] sm:$0xff]
          %v1900 = vld [vmem:[%s4 + $0x18] sm:$0xff]
          %v1901 = vld [vmem:[%s529] sm:$0xf]
          %vm1902 = vcmask 31744
          %v1904 = vsel %vm1902, %v1897, 0
          %v1907 = vsel %vm1902, %v1898, 0
          %v1910 = vsel %vm1902, %v1899, 0
          %v1913 = vsel %vm1902, %v1900, 0
          %vm1915 = vcmask 1043456
          %v1917 = vsel %vm1915, %v1901, 0
          %1919 = vmatprep.subr.mxu0 0.0
          %1920 = vmatpush1.msra.mxu0 0.0
          %1921 = vmatprep.subr.mxu0 0.0
          %1922 = vmatpush1.msra.mxu0 0.0
          %1923 = vmatprep.subr.mxu0 0.0
          %1924 = vmatpush1.msra.mxu0 0.0
          %1925 = vmatprep.subr.mxu0 0.0
          %1926 = vmatpush1.msra.mxu0 0.0
          %1927 = vmatprep.subr.mxu0 0.0
          %1928 = vmatpush1.msra.mxu0 0.0
          %1929 = vmatprep.subr.mxu0 0.0
          %1930 = vmatpush1.msra.mxu0 0.0
          %1931 = vmatprep.subr.mxu0 0.0
          %1932 = vmatpush1.msra.mxu0 0.0
          %1933 = vmatprep.subr.mxu0 0.0
          %1934 = vmatpush1.msra.mxu0 0.0
          %1935 = vmatprep.subr.mxu0 0.0
          %1936 = vmatpush1.msra.mxu0 0.0
          %1937 = vmatprep.subr.mxu0 0.0
          %1938 = vmatpush1.msra.mxu0 0.0
          %1939 = vmatprep.subr.mxu0 0.0
          %1940 = vmatpush1.msra.mxu0 0.0
          %1941 = vmatprep.subr.mxu0 0.0
          %1942 = vmatpush1.msra.mxu0 0.0
          %1943 = vmatprep.subr.mxu0 0.0
          %1944 = vmatpush1.msra.mxu0 0.0
          %1945 = vmatprep.subr.mxu0 0.0
          %1946 = vmatpush1.msra.mxu0 0.0
          %1947 = vmatprep.subr.mxu0 0.0
          %1948 = vmatpush1.msra.mxu0 0.0
          %1949 = vmatprep.subr.mxu0 0.0
          %1950 = vmatpush1.msra.mxu0 %v1917
          %1951 = vmatprep.subr.mxu0 0.0
          %1952 = vmatpush2.msra.mxu0 0.0
          %1953 = vmatprep.subr.mxu0 0.0
          %1954 = vmatpush2.msra.mxu0 0.0
          %1955 = vmatprep.subr.mxu0 0.0
          %1956 = vmatpush2.msra.mxu0 0.0
          %1957 = vmatprep.subr.mxu0 0.0
          %1958 = vmatpush2.msra.mxu0 0.0
          %1959 = vmatprep.subr.mxu0 0.0
          %1960 = vmatpush2.msra.mxu0 0.0
          %1961 = vmatprep.subr.mxu0 0.0
          %1962 = vmatpush2.msra.mxu0 0.0
          %1963 = vmatprep.subr.mxu0 0.0
          %1964 = vmatpush2.msra.mxu0 0.0
          %1965 = vmatprep.subr.mxu0 0.0
          %1966 = vmatpush2.msra.mxu0 0.0
          %1967 = vmatprep.subr.mxu0 0.0
          %1968 = vmatpush2.msra.mxu0 0.0
          %1969 = vmatprep.subr.mxu0 0.0
          %1970 = vmatpush2.msra.mxu0 0.0
          %1971 = vmatprep.subr.mxu0 0.0
          %1972 = vmatpush2.msra.mxu0 0.0
          %1973 = vmatprep.subr.mxu0 0.0
          %1974 = vmatpush2.msra.mxu0 0.0
          %1975 = vmatprep.subr.mxu0 0.0
          %1976 = vmatpush2.msra.mxu0 0.0
          %1977 = vmatprep.subr.mxu0 0.0
          %1978 = vmatpush2.msra.mxu0 0.0
          %1979 = vmatprep.subr.mxu0 0.0
          %1980 = vmatpush2.msra.mxu0 0.0
          %1981 = vmatprep.subr.mxu0 0.0
          %1982 = vmatpush2.msra.mxu0 0.0
          %1983 = vmatprep.mubr.f32.mxu0 0.0
          %1984 = vmatmul.mubr.f32.gmra.mxu0 %v1904
          %v1985 = vpop.f32.mrf.mxu0
          %v1986 = vadd.f32 0.0, %v1985
          %v1987 = vpop.f32.mrf.mxu0
          %1988 = vmatprep.mubr.f32.mxu0 0.0
          %1989 = vmatmul.mubr.f32.gmra.mxu0 %v1907
          %v1990 = vpop.f32.mrf.mxu0
          %v1991 = vadd.f32 0.0, %v1990
          %v1992 = vpop.f32.mrf.mxu0
          %1993 = vmatprep.mubr.f32.mxu0 0.0
          %1994 = vmatmul.mubr.f32.gmra.mxu0 %v1910
          %v1995 = vpop.f32.mrf.mxu0
          %v1996 = vadd.f32 0.0, %v1995
          %v1997 = vpop.f32.mrf.mxu0
          %1998 = vmatprep.mubr.f32.mxu0 0.0
          %1999 = vmatmul.mubr.f32.gmra.mxu0 %v1913
          %v2000 = vpop.f32.mrf.mxu0
          %v2001 = vadd.f32 0.0, %v2000
          %v2002 = vpop.f32.mrf.mxu0
          %2003 = vdwg.mxu0
          %v2005 = vsel %vm1902, %v1892, 0
          %v2008 = vsel %vm1902, %v1893, 0
          %v2011 = vsel %vm1902, %v1894, 0
          %v2014 = vsel %vm1902, %v1895, 0
          %v2017 = vsel %vm1915, %v1896, 0
          %2019 = vmatprep.subr.mxu0 0.0
          %2020 = vmatpush1.msra.mxu0 0.0
          %2021 = vmatprep.subr.mxu0 0.0
          %2022 = vmatpush1.msra.mxu0 0.0
          %2023 = vmatprep.subr.mxu0 0.0
          %2024 = vmatpush1.msra.mxu0 0.0
          %2025 = vmatprep.subr.mxu0 0.0
          %2026 = vmatpush1.msra.mxu0 0.0
          %2027 = vmatprep.subr.mxu0 0.0
          %2028 = vmatpush1.msra.mxu0 0.0
          %2029 = vmatprep.subr.mxu0 0.0
          %2030 = vmatpush1.msra.mxu0 0.0
          %2031 = vmatprep.subr.mxu0 0.0
          %2032 = vmatpush1.msra.mxu0 0.0
          %2033 = vmatprep.subr.mxu0 0.0
          %2034 = vmatpush1.msra.mxu0 0.0
          %2035 = vmatprep.subr.mxu0 0.0
          %2036 = vmatpush1.msra.mxu0 0.0
          %2037 = vmatprep.subr.mxu0 0.0
          %2038 = vmatpush1.msra.mxu0 0.0
          %2039 = vmatprep.subr.mxu0 0.0
          %2040 = vmatpush1.msra.mxu0 0.0
          %2041 = vmatprep.subr.mxu0 0.0
          %2042 = vmatpush1.msra.mxu0 0.0
          %2043 = vmatprep.subr.mxu0 0.0
          %2044 = vmatpush1.msra.mxu0 0.0
          %2045 = vmatprep.subr.mxu0 0.0
          %2046 = vmatpush1.msra.mxu0 0.0
          %2047 = vmatprep.subr.mxu0 0.0
          %2048 = vmatpush1.msra.mxu0 0.0
          %2049 = vmatprep.subr.mxu0 0.0
          %2050 = vmatpush1.msra.mxu0 %v2017
          %2051 = vmatprep.subr.mxu0 0.0
          %2052 = vmatpush2.msra.mxu0 0.0
          %2053 = vmatprep.subr.mxu0 0.0
          %2054 = vmatpush2.msra.mxu0 0.0
          %2055 = vmatprep.subr.mxu0 0.0
          %2056 = vmatpush2.msra.mxu0 0.0
          %2057 = vmatprep.subr.mxu0 0.0
          %2058 = vmatpush2.msra.mxu0 0.0
          %2059 = vmatprep.subr.mxu0 0.0
          %2060 = vmatpush2.msra.mxu0 0.0
          %2061 = vmatprep.subr.mxu0 0.0
          %2062 = vmatpush2.msra.mxu0 0.0
          %2063 = vmatprep.subr.mxu0 0.0
          %2064 = vmatpush2.msra.mxu0 0.0
          %2065 = vmatprep.subr.mxu0 0.0
          %2066 = vmatpush2.msra.mxu0 0.0
          %2067 = vmatprep.subr.mxu0 0.0
          %2068 = vmatpush2.msra.mxu0 0.0
          %2069 = vmatprep.subr.mxu0 0.0
          %2070 = vmatpush2.msra.mxu0 0.0
          %2071 = vmatprep.subr.mxu0 0.0
          %2072 = vmatpush2.msra.mxu0 0.0
          %2073 = vmatprep.subr.mxu0 0.0
          %2074 = vmatpush2.msra.mxu0 0.0
          %2075 = vmatprep.subr.mxu0 0.0
          %2076 = vmatpush2.msra.mxu0 0.0
          %2077 = vmatprep.subr.mxu0 0.0
          %2078 = vmatpush2.msra.mxu0 0.0
          %2079 = vmatprep.subr.mxu0 0.0
          %2080 = vmatpush2.msra.mxu0 0.0
          %2081 = vmatprep.subr.mxu0 0.0
          %2082 = vmatpush2.msra.mxu0 0.0
          %2083 = vmatprep.mubr.f32.mxu0 0.0
          %2084 = vmatmul.mubr.f32.gmra.mxu0 %v2005
          %v2085 = vpop.f32.mrf.mxu0
          %v2086 = vadd.f32 %v1986, %v2085
          %v2087 = vpop.f32.mrf.mxu0
          %2088 = vmatprep.mubr.f32.mxu0 0.0
          %2089 = vmatmul.mubr.f32.gmra.mxu0 %v2008
          %v2090 = vpop.f32.mrf.mxu0
          %v2091 = vadd.f32 %v1991, %v2090
          %v2092 = vpop.f32.mrf.mxu0
          %2093 = vmatprep.mubr.f32.mxu0 0.0
          %2094 = vmatmul.mubr.f32.gmra.mxu0 %v2011
          %v2095 = vpop.f32.mrf.mxu0
          %v2096 = vadd.f32 %v1996, %v2095
          %v2097 = vpop.f32.mrf.mxu0
          %2098 = vmatprep.mubr.f32.mxu0 0.0
          %2099 = vmatmul.mubr.f32.gmra.mxu0 %v2014
          %v2100 = vpop.f32.mrf.mxu0
          %v2101 = vadd.f32 %v2001, %v2100
          %v2102 = vpop.f32.mrf.mxu0
          %2103 = vdwg.mxu0
          %v2104 = vld [vmem:[%s5] sm:$0xff]
          %v2105 = vld [vmem:[%s5 + $0x8] sm:$0xff]
          %v2106 = vld [vmem:[%s5 + $0x10] sm:$0xff]
          %v2107 = vld [vmem:[%s5 + $0x18] sm:$0xff]
          %v2108 = vld [vmem:[%s537] sm:$0xff]
          %vm2109 = vcmask 64512
          %v2111 = vsel %vm2109, %v2104, 0
          %v2114 = vsel %vm2109, %v2105, 0
          %v2117 = vsel %vm2109, %v2106, 0
          %v2120 = vsel %vm2109, %v2107, 0
          %2122 = vmatprep.subr.mxu0 0.0
          %2123 = vmatpush1.msra.mxu0 0.0
          %2124 = vmatprep.subr.mxu0 0.0
          %2125 = vmatpush1.msra.mxu0 0.0
          %2126 = vmatprep.subr.mxu0 0.0
          %2127 = vmatpush1.msra.mxu0 0.0
          %2128 = vmatprep.subr.mxu0 0.0
          %2129 = vmatpush1.msra.mxu0 0.0
          %2130 = vmatprep.subr.mxu0 0.0
          %2131 = vmatpush1.msra.mxu0 0.0
          %2132 = vmatprep.subr.mxu0 0.0
          %2133 = vmatpush1.msra.mxu0 0.0
          %2134 = vmatprep.subr.mxu0 0.0
          %2135 = vmatpush1.msra.mxu0 0.0
          %2136 = vmatprep.subr.mxu0 0.0
          %2137 = vmatpush1.msra.mxu0 0.0
          %2138 = vmatprep.subr.mxu0 0.0
          %2139 = vmatpush1.msra.mxu0 0.0
          %2140 = vmatprep.subr.mxu0 0.0
          %2141 = vmatpush1.msra.mxu0 0.0
          %2142 = vmatprep.subr.mxu0 0.0
          %2143 = vmatpush1.msra.mxu0 0.0
          %2144 = vmatprep.subr.mxu0 0.0
          %2145 = vmatpush1.msra.mxu0 0.0
          %2146 = vmatprep.subr.mxu0 0.0
          %2147 = vmatpush1.msra.mxu0 0.0
          %2148 = vmatprep.subr.mxu0 0.0
          %2149 = vmatpush1.msra.mxu0 0.0
          %2150 = vmatprep.subr.mxu0 0.0
          %2151 = vmatpush1.msra.mxu0 0.0
          %2152 = vmatprep.subr.mxu0 0.0
          %2153 = vmatpush1.msra.mxu0 %v2108
          %2154 = vmatprep.subr.mxu0 0.0
          %2155 = vmatpush2.msra.mxu0 0.0
          %2156 = vmatprep.subr.mxu0 0.0
          %2157 = vmatpush2.msra.mxu0 0.0
          %2158 = vmatprep.subr.mxu0 0.0
          %2159 = vmatpush2.msra.mxu0 0.0
          %2160 = vmatprep.subr.mxu0 0.0
          %2161 = vmatpush2.msra.mxu0 0.0
          %2162 = vmatprep.subr.mxu0 0.0
          %2163 = vmatpush2.msra.mxu0 0.0
          %2164 = vmatprep.subr.mxu0 0.0
          %2165 = vmatpush2.msra.mxu0 0.0
          %2166 = vmatprep.subr.mxu0 0.0
          %2167 = vmatpush2.msra.mxu0 0.0
          %2168 = vmatprep.subr.mxu0 0.0
          %2169 = vmatpush2.msra.mxu0 0.0
          %2170 = vmatprep.subr.mxu0 0.0
          %2171 = vmatpush2.msra.mxu0 0.0
          %2172 = vmatprep.subr.mxu0 0.0
          %2173 = vmatpush2.msra.mxu0 0.0
          %2174 = vmatprep.subr.mxu0 0.0
          %2175 = vmatpush2.msra.mxu0 0.0
          %2176 = vmatprep.subr.mxu0 0.0
          %2177 = vmatpush2.msra.mxu0 0.0
          %2178 = vmatprep.subr.mxu0 0.0
          %2179 = vmatpush2.msra.mxu0 0.0
          %2180 = vmatprep.subr.mxu0 0.0
          %2181 = vmatpush2.msra.mxu0 0.0
          %2182 = vmatprep.subr.mxu0 0.0
          %2183 = vmatpush2.msra.mxu0 0.0
          %2184 = vmatprep.subr.mxu0 0.0
          %2185 = vmatpush2.msra.mxu0 0.0
          %2186 = vmatprep.mubr.f32.mxu0 0.0
          %2187 = vmatmul.mubr.f32.gmra.mxu0 %v2111
          %v2188 = vpop.f32.mrf.mxu0
          %v2189 = vadd.f32 0.0, %v2188
          %v2190 = vpop.f32.mrf.mxu0
          %2191 = vmatprep.mubr.f32.mxu0 0.0
          %2192 = vmatmul.mubr.f32.gmra.mxu0 %v2114
          %v2193 = vpop.f32.mrf.mxu0
          %v2194 = vadd.f32 0.0, %v2193
          %v2195 = vpop.f32.mrf.mxu0
          %2196 = vmatprep.mubr.f32.mxu0 0.0
          %2197 = vmatmul.mubr.f32.gmra.mxu0 %v2117
          %v2198 = vpop.f32.mrf.mxu0
          %v2199 = vadd.f32 0.0, %v2198
          %v2200 = vpop.f32.mrf.mxu0
          %2201 = vmatprep.mubr.f32.mxu0 0.0
          %2202 = vmatmul.mubr.f32.gmra.mxu0 %v2120
          %v2203 = vpop.f32.mrf.mxu0
          %v2204 = vadd.f32 0.0, %v2203
          %v2205 = vpop.f32.mrf.mxu0
          %2206 = vdwg.mxu0
          %v2207 = vadd.f32 %v2086, %v2189
          %v2208 = vadd.f32 %v2091, %v2194
          %v2209 = vadd.f32 %v2096, %v2199
          %v2210 = vadd.f32 %v2101, %v2204
          %v2211 = vld [vmem:[#allocation3] sm:$0xff]
          %v2212 = vld [vmem:[#allocation3 + $0x8] sm:$0xff]
          %v2213 = vld [vmem:[#allocation3 + $0x10] sm:$0xff]
          %v2214 = vld [vmem:[#allocation3 + $0x18] sm:$0xff]
          %2216 = vset.pattern.permute.xlu0 0
          %2217 = vperm.xlu0 %2216, %v2211
          %v2218 = vpop.permute.xlu0 %2217
          %2221 = vset.pattern.permute.xlu0 0
          %2222 = vperm.xlu0 %2221, %v2212
          %v2223 = vpop.permute.xlu0 %2222
          %2226 = vset.pattern.permute.xlu0 0
          %2227 = vperm.xlu0 %2226, %v2213
          %v2228 = vpop.permute.xlu0 %2227
          %2231 = vset.pattern.permute.xlu0 0
          %2232 = vperm.xlu0 %2231, %v2214
          %v2233 = vpop.permute.xlu0 %2232
          %v2235 = vmul.f32 %v2207, %v2218
          %v2236 = vmul.f32 %v2208, %v2223
          %v2237 = vmul.f32 %v2209, %v2228
          %v2238 = vmul.f32 %v2210, %v2233
          %2239 = vset.pattern.permute.xlu0 1
          %2240 = vperm.xlu0 %2239, %v2211
          %v2241 = vpop.permute.xlu0 %2240
          %2243 = vset.pattern.permute.xlu0 1
          %2244 = vperm.xlu0 %2243, %v2212
          %v2245 = vpop.permute.xlu0 %2244
          %2247 = vset.pattern.permute.xlu0 1
          %2248 = vperm.xlu0 %2247, %v2213
          %v2249 = vpop.permute.xlu0 %2248
          %2251 = vset.pattern.permute.xlu0 1
          %2252 = vperm.xlu0 %2251, %v2214
          %v2253 = vpop.permute.xlu0 %2252
          %v2255 = vadd.f32 %v2235, %v2241
          %v2256 = vadd.f32 %v2236, %v2245
          %v2257 = vadd.f32 %v2237, %v2249
          %v2258 = vadd.f32 %v2238, %v2253
          %v2259 = vmax.f32 %v2255, 0.0
          %v2260 = vmax.f32 %v2256, 0.0
          %v2261 = vmax.f32 %v2257, 0.0
          %v2262 = vmax.f32 %v2258, 0.0
          %v2263 = vld [vmem:[%s10] sm:$0xff]
          %v2264 = vld [vmem:[%s11] sm:$0xff]
          %2266 = vset.pattern.permute.xlu0 0
          %2267 = vperm.xlu0 %2266, %v2264
          %v2268 = vpop.permute.xlu0 %2267
          %vm2270 = vcmask 261120
          %v2272 = vsel %vm2270, %v2263, 0
          %2274 = vmatprep.subr.mxu0 0.0
          %2275 = vmatpush1.msra.mxu0 0.0
          %2276 = vmatprep.subr.mxu0 0.0
          %2277 = vmatpush1.msra.mxu0 0.0
          %2278 = vmatprep.subr.mxu0 0.0
          %2279 = vmatpush1.msra.mxu0 0.0
          %2280 = vmatprep.subr.mxu0 0.0
          %2281 = vmatpush1.msra.mxu0 0.0
          %2282 = vmatprep.subr.mxu0 0.0
          %2283 = vmatpush1.msra.mxu0 0.0
          %2284 = vmatprep.subr.mxu0 0.0
          %2285 = vmatpush1.msra.mxu0 0.0
          %2286 = vmatprep.subr.mxu0 0.0
          %2287 = vmatpush1.msra.mxu0 0.0
          %2288 = vmatprep.subr.mxu0 0.0
          %2289 = vmatpush1.msra.mxu0 0.0
          %2290 = vmatprep.subr.mxu0 0.0
          %2291 = vmatpush1.msra.mxu0 0.0
          %2292 = vmatprep.subr.mxu0 0.0
          %2293 = vmatpush1.msra.mxu0 0.0
          %2294 = vmatprep.subr.mxu0 0.0
          %2295 = vmatpush1.msra.mxu0 0.0
          %2296 = vmatprep.subr.mxu0 0.0
          %2297 = vmatpush1.msra.mxu0 0.0
          %2298 = vmatprep.subr.mxu0 0.0
          %2299 = vmatpush1.msra.mxu0 %v2262
          %2300 = vmatprep.subr.mxu0 0.0
          %2301 = vmatpush1.msra.mxu0 %v2261
          %2302 = vmatprep.subr.mxu0 0.0
          %2303 = vmatpush1.msra.mxu0 %v2260
          %2304 = vmatprep.subr.mxu0 0.0
          %2305 = vmatpush1.msra.mxu0 %v2259
          %2306 = vmatprep.subr.mxu0 0.0
          %2307 = vmatpush2.msra.mxu0 0.0
          %2308 = vmatprep.subr.mxu0 0.0
          %2309 = vmatpush2.msra.mxu0 0.0
          %2310 = vmatprep.subr.mxu0 0.0
          %2311 = vmatpush2.msra.mxu0 0.0
          %2312 = vmatprep.subr.mxu0 0.0
          %2313 = vmatpush2.msra.mxu0 0.0
          %2314 = vmatprep.subr.mxu0 0.0
          %2315 = vmatpush2.msra.mxu0 0.0
          %2316 = vmatprep.subr.mxu0 0.0
          %2317 = vmatpush2.msra.mxu0 0.0
          %2318 = vmatprep.subr.mxu0 0.0
          %2319 = vmatpush2.msra.mxu0 0.0
          %2320 = vmatprep.subr.mxu0 0.0
          %2321 = vmatpush2.msra.mxu0 0.0
          %2322 = vmatprep.subr.mxu0 0.0
          %2323 = vmatpush2.msra.mxu0 0.0
          %2324 = vmatprep.subr.mxu0 0.0
          %2325 = vmatpush2.msra.mxu0 0.0
          %2326 = vmatprep.subr.mxu0 0.0
          %2327 = vmatpush2.msra.mxu0 0.0
          %2328 = vmatprep.subr.mxu0 0.0
          %2329 = vmatpush2.msra.mxu0 0.0
          %2330 = vmatprep.subr.mxu0 0.0
          %2331 = vmatpush2.msra.mxu0 0.0
          %2332 = vmatprep.subr.mxu0 0.0
          %2333 = vmatpush2.msra.mxu0 0.0
          %2334 = vmatprep.subr.mxu0 0.0
          %2335 = vmatpush2.msra.mxu0 0.0
          %2336 = vmatprep.subr.mxu0 0.0
          %2337 = vmatpush2.msra.mxu0 0.0
          %2338 = vmatprep.mubr.f32.mxu0 0.0
          %2339 = vmatmul.mubr.f32.gmra.mxu0 %v2272
          %v2340 = vpop.f32.mrf.mxu0
          %v2341 = vadd.f32 %v2268, %v2340
          %v2342 = vpop.f32.mrf.mxu0
          %2343 = vdwg.mxu0
          %v2344 = vmul.f32 %v2341, %v2341
          %v2345 = vrot.slane %v2344, 4
          %v2346 = vadd.f32 %v2344, %v2345
          %v2347 = vrot.slane %v2346, 2
          %v2348 = vadd.f32 %v2346, %v2347
          %v2349 = vrot.slane %v2348, 1
          %v2350 = vadd.f32 %v2348, %v2349
          %v2351 = vrsqrt.pop %v2350
          %v2352 = vmul.f32 %v2341, %v2351
          %v2353 = vld [vmem:[#allocation4] sm:$0xff]
          %v2354 = vadd.f32 %v2353, 1e-06
          %2356 = vset.pattern.permute.xlu0 0
          %2357 = vperm.xlu0 %2356, %v2354
          %v2358 = vpop.permute.xlu0 %2357
          %v2360 = vmul.f32 %v2352, %v2358
          %v2361 = vrot.slane %v2360, 4
          %v2362 = vadd.f32 %v2360, %v2361
          %v2363 = vrot.slane %v2362, 2
          %v2364 = vadd.f32 %v2362, %v2363
          %v2365 = vrot.slane %v2364, 1
          %v2366 = vadd.f32 %v2364, %v2365
          %v2367 = vadd.f32 %v2366, 256.0
          %v2368 = vrcp.pop %v2367
          %v2369 = vmul.f32 1.0, %v2368
          %v2370 = vld [vmem:[#allocation6] sm:$0xff]
          %v2371 = vld [vmem:[#allocation6 + $0x8] sm:$0xff]
          %v2372 = vld [vmem:[#allocation6 + $0x10] sm:$0xff]
          %v2373 = vld [vmem:[#allocation6 + $0x18] sm:$0xff]
          %v2375 = vsel %vm2109, %v2370, 0
          %v2378 = vsel %vm2109, %v2371, 0
          %v2381 = vsel %vm2109, %v2372, 0
          %v2384 = vsel %vm2109, %v2373, 0
          %2386 = vmatprep.subr.mxu0 0.0
          %2387 = vmatpush1.msra.mxu0 0.0
          %2388 = vmatprep.subr.mxu0 0.0
          %2389 = vmatpush1.msra.mxu0 0.0
          %2390 = vmatprep.subr.mxu0 0.0
          %2391 = vmatpush1.msra.mxu0 0.0
          %2392 = vmatprep.subr.mxu0 0.0
          %2393 = vmatpush1.msra.mxu0 0.0
          %2394 = vmatprep.subr.mxu0 0.0
          %2395 = vmatpush1.msra.mxu0 0.0
          %2396 = vmatprep.subr.mxu0 0.0
          %2397 = vmatpush1.msra.mxu0 0.0
          %2398 = vmatprep.subr.mxu0 0.0
          %2399 = vmatpush1.msra.mxu0 0.0
          %2400 = vmatprep.subr.mxu0 0.0
          %2401 = vmatpush1.msra.mxu0 0.0
          %2402 = vmatprep.subr.mxu0 0.0
          %2403 = vmatpush1.msra.mxu0 0.0
          %2404 = vmatprep.subr.mxu0 0.0
          %2405 = vmatpush1.msra.mxu0 0.0
          %2406 = vmatprep.subr.mxu0 0.0
          %2407 = vmatpush1.msra.mxu0 0.0
          %2408 = vmatprep.subr.mxu0 0.0
          %2409 = vmatpush1.msra.mxu0 0.0
          %2410 = vmatprep.subr.mxu0 0.0
          %2411 = vmatpush1.msra.mxu0 0.0
          %2412 = vmatprep.subr.mxu0 0.0
          %2413 = vmatpush1.msra.mxu0 0.0
          %2414 = vmatprep.subr.mxu0 0.0
          %2415 = vmatpush1.msra.mxu0 0.0
          %2416 = vmatprep.subr.mxu0 0.0
          %2417 = vmatpush1.msra.mxu0 %v2352
          %2418 = vmatprep.subr.mxu0 0.0
          %2419 = vmatpush2.msra.mxu0 0.0
          %2420 = vmatprep.subr.mxu0 0.0
          %2421 = vmatpush2.msra.mxu0 0.0
          %2422 = vmatprep.subr.mxu0 0.0
          %2423 = vmatpush2.msra.mxu0 0.0
          %2424 = vmatprep.subr.mxu0 0.0
          %2425 = vmatpush2.msra.mxu0 0.0
          %2426 = vmatprep.subr.mxu0 0.0
          %2427 = vmatpush2.msra.mxu0 0.0
          %2428 = vmatprep.subr.mxu0 0.0
          %2429 = vmatpush2.msra.mxu0 0.0
          %2430 = vmatprep.subr.mxu0 0.0
          %2431 = vmatpush2.msra.mxu0 0.0
          %2432 = vmatprep.subr.mxu0 0.0
          %2433 = vmatpush2.msra.mxu0 0.0
          %2434 = vmatprep.subr.mxu0 0.0
          %2435 = vmatpush2.msra.mxu0 0.0
          %2436 = vmatprep.subr.mxu0 0.0
          %2437 = vmatpush2.msra.mxu0 0.0
          %2438 = vmatprep.subr.mxu0 0.0
          %2439 = vmatpush2.msra.mxu0 0.0
          %2440 = vmatprep.subr.mxu0 0.0
          %2441 = vmatpush2.msra.mxu0 0.0
          %2442 = vmatprep.subr.mxu0 0.0
          %2443 = vmatpush2.msra.mxu0 0.0
          %2444 = vmatprep.subr.mxu0 0.0
          %2445 = vmatpush2.msra.mxu0 0.0
          %2446 = vmatprep.subr.mxu0 0.0
          %2447 = vmatpush2.msra.mxu0 0.0
          %2448 = vmatprep.subr.mxu0 0.0
          %2449 = vmatpush2.msra.mxu0 0.0
          %2450 = vmatprep.mubr.f32.mxu0 0.0
          %2451 = vmatmul.mubr.f32.gmra.mxu0 %v2375
          %v2452 = vpop.f32.mrf.mxu0
          %v2453 = vadd.f32 0.0, %v2452
          %v2454 = vpop.f32.mrf.mxu0
          %2455 = vmatprep.mubr.f32.mxu0 0.0
          %2456 = vmatmul.mubr.f32.gmra.mxu0 %v2378
          %v2457 = vpop.f32.mrf.mxu0
          %v2458 = vadd.f32 0.0, %v2457
          %v2459 = vpop.f32.mrf.mxu0
          %2460 = vmatprep.mubr.f32.mxu0 0.0
          %2461 = vmatmul.mubr.f32.gmra.mxu0 %v2381
          %v2462 = vpop.f32.mrf.mxu0
          %v2463 = vadd.f32 0.0, %v2462
          %v2464 = vpop.f32.mrf.mxu0
          %2465 = vmatprep.mubr.f32.mxu0 0.0
          %2466 = vmatmul.mubr.f32.gmra.mxu0 %v2384
          %v2467 = vpop.f32.mrf.mxu0
          %v2468 = vadd.f32 0.0, %v2467
          %v2469 = vpop.f32.mrf.mxu0
          %2470 = vdwg.mxu0
          %s2471 = sld [smem:[#allocation7]]
          %v2472 = vld [vmem:[#allocation5] sm:$0xff]
          %v2473 = vld [vmem:[#allocation5 + $0x8] sm:$0xff]
          %v2474 = vld [vmem:[#allocation5 + $0x10] sm:$0xff]
          %v2475 = vld [vmem:[#allocation5 + $0x18] sm:$0xff]
          %2477 = vset.pattern.permute.xlu0 0
          %2478 = vperm.xlu0 %2477, %v2472
          %v2479 = vpop.permute.xlu0 %2478
          %2482 = vset.pattern.permute.xlu0 0
          %2483 = vperm.xlu0 %2482, %v2473
          %v2484 = vpop.permute.xlu0 %2483
          %2487 = vset.pattern.permute.xlu0 0
          %2488 = vperm.xlu0 %2487, %v2474
          %v2489 = vpop.permute.xlu0 %2488
          %2492 = vset.pattern.permute.xlu0 0
          %2493 = vperm.xlu0 %2492, %v2475
          %v2494 = vpop.permute.xlu0 %2493
          %v2496 = vadd.f32 %v2479, %v2453
          %v2497 = vadd.f32 %v2484, %v2458
          %v2498 = vadd.f32 %v2489, %v2463
          %v2499 = vadd.f32 %v2494, %v2468
          %v2500 = vmul.f32 %v2496, %v2369
          %v2501 = vmul.f32 %v2497, %v2369
          %v2502 = vmul.f32 %v2498, %v2369
          %v2503 = vmul.f32 %v2499, %v2369
          %v2504 = vstv %s2471
          %v2505 = vmul.f32 %v2504, %v2500
          %v2506 = vmul.f32 %v2504, %v2501
          %v2507 = vmul.f32 %v2504, %v2502
          %v2508 = vmul.f32 %v2504, %v2503
          %v2509 = vadd.f32 %v2505, %v2259
          %v2510 = vadd.f32 %v2506, %v2260
          %v2511 = vadd.f32 %v2507, %v2261
          %v2512 = vadd.f32 %v2508, %v2262
          %2513 = vst [vmem:[%s513] sm:$0xff] %v2509
          %2514 = vst [vmem:[%s513 + $0x8] sm:$0xff] %v2510
          %2515 = vst [vmem:[%s513 + $0x10] sm:$0xff] %v2511
          %2516 = vst [vmem:[%s513 + $0x18] sm:$0xff] %v2512
        $region92: #{tpu_custom_call.1} parent=71 // pred_fallthru
          _
        %s2517 = sand.u32 %s355, 1
        %s2518 = scalar_lea.sflag [#allocation9], %s2517
        %s2519 = sand.u32 %s355, 1
        %s2520 = smul.addr %s2519, 32
        %s2521 = scalar_lea.vmem [#allocation8], %s2520
        // Predicated region
        $region93: #{tpu_custom_call.1} parent=71 // pred_check
          %p2522 = pneg %p365
        $region94: #{tpu_custom_call.1} parent=71 // pred_check_branch
          %2524 = sbr.rel (%p2522) target = $region96
        $region95: #{tpu_custom_call.1} parent=71 // pred_region
          %p2525 = scmp.eq.s32.totalorder %s34, 2
          %s2526 = scalar_select %p2525, %s35, 0
          %s2528 = ssub.s32 512, 512
          %2529 = vsyncadd %s2518, %s2528
          %s2530 = smul.addr %s33, 8
          %s2531 = sadd.s32 %s2526, %s2530
          %s2532 = smul.addr %s2531, 128
          %s2533 = scalar_lea.hbm %s13, %s2532
          %s2534 = sshll.u32 %s2521, 4
          %s2535 = int_to_ptr.vmem [resolvable:$true] %s2534
          %2540 = dma.vmem_to_hbm [thread:$0]  %s2535, 512, %s2533, %s2518, 128, 256, 8
        $region96: #{tpu_custom_call.1} parent=71 // pred_fallthru
          _
      $region72: #{tpu_custom_call.1} parent=5 // pred_fallthru
        _
      %p2541 = scmp.le.s32.totalorder 2, %s23
      // Predicated region
      $region97: #{tpu_custom_call.1} parent=5 // pred_check
        %p2542 = pneg %p2541
      $region98: #{tpu_custom_call.1} parent=5 // pred_check_branch
        %2544 = sbr.rel (%p2542) target = $region100
      $region99: #{tpu_custom_call.1} parent=5 // pred_region
        %s2545 = ssub.s32 %s23, 2
        // Predicated region
        $region101: #{tpu_custom_call.1} parent=99 // pred_check
          %p2546 = pneg %p371
        $region102: #{tpu_custom_call.1} parent=99 // pred_check_branch
          %2548 = sbr.rel (%p2546) target = $region104
        $region103: #{tpu_custom_call.1} parent=99 // pred_region
          %s2549 = sand.u32 %s356, 1
          %s2550 = scalar_lea.sflag [#allocation9], %s2549
          %s2551 = sand.u32 %s356, 1
          %s2552 = smul.addr %s2551, 32
          %s2553 = scalar_lea.vmem [#allocation8], %s2552
          %2554 = dma.done %s2550, 512
        $region104: #{tpu_custom_call.1} parent=99 // pred_fallthru
          _
      $region100: #{tpu_custom_call.1} parent=5 // pred_fallthru
        _
    $region6: #{tpu_custom_call.1} parent=1 // loop_footer
      %s27 = sadd.s32 1, %s23
    $region7: #{tpu_custom_call.1} parent=1 // loop_footer_branch
      %22 = sbr.rel target = $region3
    $region8: #{tpu_custom_call.1} parent=1 // loop_exit
      _
    %2555 = vsyncpa [#allocation9], 1
    %s2556 = scalar_lea.sflag [#allocation9], 1
    %2557 = vsyncpa %s2556, 1

</llo_original>
